<compile_context>
chip_gen: v6e
topology: v6e:2x2x1
jax: 0.10.0
libtpu: 0.0.40
codegen_flags: <defaults>
</compile_context>

<pallas_src>
import functools

import jax
import jax.numpy as jnp
from jax.experimental import pallas as pl
from jax.experimental.pallas import tpu as pltpu  # noqa: F401  (TPU backend)

EPS = 1e-5  # nn.LayerNorm default


def block_kernel(x_ref, ln1_g_ref, ln1_b_ref,
                 wq_ref, wk_ref, wv_ref, wp_ref, bp_ref,
                 ln2_g_ref, ln2_b_ref,
                 w1_ref, b1_ref, w2_ref, b2_ref,
                 out_ref, *, batch, seq, num_heads, head_size):
    f32 = jnp.float32
    bf16 = jnp.bfloat16

    x = x_ref[...]                    # (B*T, E) float32
    BT, E = x.shape
    B, T = batch, seq

    def layernorm(h, g, b):           # g, b are (1, E) f32
        mu = jnp.mean(h, axis=-1, keepdims=True)
        var = jnp.mean((h - mu) ** 2, axis=-1, keepdims=True)
        return (h - mu) * jax.lax.rsqrt(var + EPS) * g + b

    # ---- self-attention branch -------------------------------------------
    h1 = layernorm(x, ln1_g_ref[...], ln1_b_ref[...])          # (BT, E) f32
    h1_bf = h1.astype(bf16)

    # Additive causal mask (0 where allowed, -1e30 where masked), built once.
    row = jax.lax.broadcasted_iota(jnp.int32, (T, T), 0)
    col = jax.lax.broadcasted_iota(jnp.int32, (T, T), 1)
    neg_mask = jnp.where(row >= col, 0.0, -1e30).astype(f32)   # (T, T)

    sa = jnp.zeros((BT, E), f32)
    for h in range(num_heads):        # static unroll; no lane slicing, no concat
        wq_h = wq_ref[h]              # (E, hs) bf16, E**-0.5 already folded in
        wk_h = wk_ref[h]              # (E, hs) bf16
        wv_h = wv_ref[h]              # (E, hs) bf16
        wp_h = wp_ref[h]              # (hs, E) bf16  (slice of proj weight)

        q = jnp.dot(h1_bf, wq_h, preferred_element_type=f32).reshape(B, T, head_size)
        k = jnp.dot(h1_bf, wk_h, preferred_element_type=f32).reshape(B, T, head_size)
        v = jnp.dot(h1_bf, wv_h, preferred_element_type=f32).reshape(B, T, head_size)

        s = jnp.einsum('bqd,bkd->bqk', q.astype(bf16), k.astype(bf16),
                       preferred_element_type=f32)              # (B, T, T)
        s = s + neg_mask                                        # additive mask
        m = jnp.max(s, axis=-1, keepdims=True)
        p = jnp.exp(s - m)
        denom = jnp.sum(p, axis=-1, keepdims=True)
        p = p * pl.reciprocal(denom, approx=True)               # softmax
        # TODO(synk): attention dropout omitted (inference / eval mode -> identity)

        ctx = jnp.einsum('bqk,bkd->bqd', p.astype(bf16), v.astype(bf16),
                         preferred_element_type=f32)            # (B, T, hs)
        # Accumulate this head's contribution to the output projection:
        # concat_h(ctx_h) @ Wp == sum_h ctx_h @ Wp[h*hs:(h+1)*hs, :]
        sa = sa + jnp.dot(ctx.reshape(BT, head_size).astype(bf16), wp_h,
                          preferred_element_type=f32)

    sa = sa + bp_ref[...]                                       # proj bias
    x1 = x + sa                                                 # residual 1

    # ---- feed-forward branch ---------------------------------------------
    h2 = layernorm(x1, ln2_g_ref[...], ln2_b_ref[...])
    hid = jnp.dot(h2.astype(bf16), w1_ref[...],
                  preferred_element_type=f32) + b1_ref[...]
    hid = jnp.maximum(hid, 0.0)                                 # ReLU
    ff = jnp.dot(hid.astype(bf16), w2_ref[...],
                 preferred_element_type=f32) + b2_ref[...]
    # TODO(synk): FFN dropout omitted (inference / eval mode -> identity)

    out_ref[...] = (x1 + ff).astype(out_ref.dtype)              # residual 2


def block_forward(x, params, num_heads):
    B, T, E = x.shape
    hs = E // num_heads
    (ln1_g, ln1_b, wq, wk, wv, wp, bp, ln2_g, ln2_b, w1, b1, w2, b2) = params

    # Wrapper-side (pure JAX) weight prep: fold the E**-0.5 score scale into Wq,
    # split per-head slabs so the kernel never slices along the lane axis, and
    # cast matmul operands to bf16 (MXU native; halves weight DMA bytes).
    scale = E ** (-0.5)

    def per_head_in(w):               # (E, H*hs) -> (H, E, hs)
        return jnp.transpose(w.reshape(E, num_heads, hs), (1, 0, 2))

    wq_h = per_head_in(wq * scale).astype(jnp.bfloat16)
    wk_h = per_head_in(wk).astype(jnp.bfloat16)
    wv_h = per_head_in(wv).astype(jnp.bfloat16)
    wp_h = wp.reshape(num_heads, hs, E).astype(jnp.bfloat16)    # (H, hs, E)
    w1_bf = w1.astype(jnp.bfloat16)
    w2_bf = w2.astype(jnp.bfloat16)

    x2 = x.reshape(B * T, E)          # flat residual stream

    args = (x2, ln1_g, ln1_b, wq_h, wk_h, wv_h, wp_h, bp,
            ln2_g, ln2_b, w1_bf, b1, w2_bf, b2)

    def fullspec(shape):              # whole-array block, single grid step
        return pl.BlockSpec(shape, lambda: (0,) * len(shape))

    kernel = functools.partial(block_kernel, batch=B, seq=T,
                               num_heads=num_heads, head_size=hs)

    out2 = pl.pallas_call(
        kernel,
        out_shape=jax.ShapeDtypeStruct((B * T, E), x.dtype),
        in_specs=[fullspec(a.shape) for a in args],
        out_specs=fullspec((B * T, E)),
    )(*args)
    return out2.reshape(B, T, E)


def ref_forward(x, params, num_heads):
    """Pure-JAX reference mirroring the PyTorch Block (eval mode, f32)."""
    (ln1_g, ln1_b, wq, wk, wv, wp, bp, ln2_g, ln2_b, w1, b1, w2, b2) = params
    B, T, E = x.shape
    hs = E // num_heads

    def ln(h, g, b):
        mu = h.mean(-1, keepdims=True)
        var = ((h - mu) ** 2).mean(-1, keepdims=True)
        return (h - mu) / jnp.sqrt(var + EPS) * g + b

    h1 = ln(x, ln1_g, ln1_b)
    q, k, v = h1 @ wq, h1 @ wk, h1 @ wv
    mask = jnp.tril(jnp.ones((T, T), bool))
    outs = []
    for h in range(num_heads):
        s = h * hs
        w = (q[..., s:s + hs] @ jnp.swapaxes(k[..., s:s + hs], -1, -2)) * E ** -0.5
        w = jnp.where(mask, w, -jnp.inf)
        w = jax.nn.softmax(w, axis=-1)
        outs.append(w @ v[..., s:s + hs])
    attn = jnp.concatenate(outs, -1)
    x1 = x + attn @ wp + bp
    h2 = ln(x1, ln2_g, ln2_b)
    ff = jnp.maximum(h2 @ w1 + b1, 0.0) @ w2 + b2
    return x1 + ff


def init_params(key, E):
    ks = jax.random.split(key, 8)
    scale = 0.02
    ln1_g = jnp.ones((1, E), jnp.float32)
    ln1_b = jnp.zeros((1, E), jnp.float32)
    ln2_g = jnp.ones((1, E), jnp.float32)
    ln2_b = jnp.zeros((1, E), jnp.float32)
    wq = scale * jax.random.normal(ks[0], (E, E), jnp.float32)
    wk = scale * jax.random.normal(ks[1], (E, E), jnp.float32)
    wv = scale * jax.random.normal(ks[2], (E, E), jnp.float32)
    wp = scale * jax.random.normal(ks[3], (E, E), jnp.float32)
    bp = scale * jax.random.normal(ks[4], (1, E), jnp.float32)
    w1 = scale * jax.random.normal(ks[5], (E, 4 * E), jnp.float32)
    b1 = jnp.zeros((1, 4 * E), jnp.float32)
    w2 = scale * jax.random.normal(ks[6], (4 * E, E), jnp.float32)
    b2 = scale * jax.random.normal(ks[7], (1, E), jnp.float32)
    return (ln1_g, ln1_b, wq, wk, wv, wp, bp, ln2_g, ln2_b, w1, b1, w2, b2)


if __name__ == "__main__":
    # cfg: num_embeddings=32, head_size(=num_heads)=4, block_size=8, dropout=0.2
    B, T, E, NUM_HEADS = 2, 8, 32, 4

    key = jax.random.PRNGKey(0)
    kx, kp = jax.random.split(key)
    x = jax.random.normal(kx, (B, T, E), jnp.float32)
    params = init_params(kp, E)

    out = block_forward(x, params, NUM_HEADS)
    out = jax.block_until_ready(out)

    ref = ref_forward(x, params, NUM_HEADS)
    assert out.shape == (B, T, E)
    # bf16 matmul operands (f32 accumulation) => loosen tolerance vs f32 reference.
    assert jnp.allclose(out, ref, rtol=2e-2, atol=2e-2), "mismatch vs reference"

    print("KERNEL_OK")
</pallas_src>

<mosaic_0001>
module attributes {stable_mosaic.version = 11 : i64} {
  func.func @block_kernel(%arg0: memref<16x32xf32, #tpu.memory_space<vmem>>, %arg1: memref<1x32xf32, #tpu.memory_space<vmem>>, %arg2: memref<1x32xf32, #tpu.memory_space<vmem>>, %arg3: memref<4x32x8xbf16, #tpu.memory_space<vmem>>, %arg4: memref<4x32x8xbf16, #tpu.memory_space<vmem>>, %arg5: memref<4x32x8xbf16, #tpu.memory_space<vmem>>, %arg6: memref<4x8x32xbf16, #tpu.memory_space<vmem>>, %arg7: memref<1x32xf32, #tpu.memory_space<vmem>>, %arg8: memref<1x32xf32, #tpu.memory_space<vmem>>, %arg9: memref<1x32xf32, #tpu.memory_space<vmem>>, %arg10: memref<32x128xbf16, #tpu.memory_space<vmem>>, %arg11: memref<1x128xf32, #tpu.memory_space<vmem>>, %arg12: memref<128x32xbf16, #tpu.memory_space<vmem>>, %arg13: memref<1x32xf32, #tpu.memory_space<vmem>>, %arg14: memref<16x32xf32, #tpu.memory_space<vmem>>) attributes {dimension_semantics = [], scalar_prefetch = 0 : i64, scratch_operands = 0 : i64, tpu.core_type = #tpu.core_type<tc>} {
    %c0 = arith.constant 0 : index
    %c0_0 = arith.constant 0 : index
    %0 = vector.load %arg0[%c0, %c0_0] : memref<16x32xf32, #tpu.memory_space<vmem>>, vector<16x32xf32>
    %c0_1 = arith.constant 0 : index
    %c0_2 = arith.constant 0 : index
    %1 = vector.load %arg1[%c0_1, %c0_2] : memref<1x32xf32, #tpu.memory_space<vmem>>, vector<1x32xf32>
    %c0_3 = arith.constant 0 : index
    %c0_4 = arith.constant 0 : index
    %2 = vector.load %arg2[%c0_3, %c0_4] : memref<1x32xf32, #tpu.memory_space<vmem>>, vector<1x32xf32>
    %cst = arith.constant dense<0.000000e+00> : vector<16xf32>
    %3 = vector.multi_reduction <add>, %0, %cst [1] : vector<16x32xf32> to vector<16xf32>
    %4 = vector.shape_cast %3 : vector<16xf32> to vector<16x1xf32>
    %cst_5 = arith.constant 3.200000e+01 : f32
    %5 = vector.broadcast %cst_5 : f32 to vector<16x1xf32>
    %6 = arith.divf %4, %5 : vector<16x1xf32>
    %7 = vector.broadcast %6 : vector<16x1xf32> to vector<16x32xf32>
    %8 = arith.subf %0, %7 : vector<16x32xf32>
    %9 = arith.mulf %8, %8 : vector<16x32xf32>
    %cst_6 = arith.constant dense<0.000000e+00> : vector<16xf32>
    %10 = vector.multi_reduction <add>, %9, %cst_6 [1] : vector<16x32xf32> to vector<16xf32>
    %11 = vector.shape_cast %10 : vector<16xf32> to vector<16x1xf32>
    %cst_7 = arith.constant 3.200000e+01 : f32
    %12 = vector.broadcast %cst_7 : f32 to vector<16x1xf32>
    %13 = arith.divf %11, %12 : vector<16x1xf32>
    %14 = vector.broadcast %6 : vector<16x1xf32> to vector<16x32xf32>
    %15 = arith.subf %0, %14 : vector<16x32xf32>
    %cst_8 = arith.constant 9.99999974E-6 : f32
    %16 = vector.broadcast %cst_8 : f32 to vector<16x1xf32>
    %17 = arith.addf %13, %16 : vector<16x1xf32>
    %18 = math.rsqrt %17 : vector<16x1xf32>
    %19 = vector.broadcast %18 : vector<16x1xf32> to vector<16x32xf32>
    %20 = arith.mulf %15, %19 : vector<16x32xf32>
    %21 = vector.broadcast %1 : vector<1x32xf32> to vector<16x32xf32>
    %22 = arith.mulf %20, %21 : vector<16x32xf32>
    %23 = vector.broadcast %2 : vector<1x32xf32> to vector<16x32xf32>
    %24 = arith.addf %22, %23 : vector<16x32xf32>
    %25 = arith.truncf %24 : vector<16x32xf32> to vector<16x32xbf16>
    %26 = tpu.iota {dimensions = array<i32: 0>} : vector<8x8xi32>
    %27 = tpu.iota {dimensions = array<i32: 1>} : vector<8x8xi32>
    %28 = arith.cmpi sge, %26, %27 : vector<8x8xi32>
    %cst_9 = arith.constant 0.000000e+00 : f32
    %cst_10 = arith.constant -1.000000e+30 : f32
    %29 = vector.broadcast %cst_9 : f32 to vector<8x8xf32>
    %30 = vector.broadcast %cst_10 : f32 to vector<8x8xf32>
    %31 = arith.select %28, %29, %30 : vector<8x8xi1>, vector<8x8xf32>
    %cst_11 = arith.constant 0.000000e+00 : f32
    %32 = vector.broadcast %cst_11 : f32 to vector<16x32xf32>
    %c0_12 = arith.constant 0 : index
    %c0_13 = arith.constant 0 : index
    %c0_14 = arith.constant 0 : index
    %33 = vector.load %arg3[%c0_12, %c0_13, %c0_14] : memref<4x32x8xbf16, #tpu.memory_space<vmem>>, vector<1x32x8xbf16>
    %34 = vector.shape_cast %33 : vector<1x32x8xbf16> to vector<32x8xbf16>
    %c0_15 = arith.constant 0 : index
    %c0_16 = arith.constant 0 : index
    %c0_17 = arith.constant 0 : index
    %35 = vector.load %arg4[%c0_15, %c0_16, %c0_17] : memref<4x32x8xbf16, #tpu.memory_space<vmem>>, vector<1x32x8xbf16>
    %36 = vector.shape_cast %35 : vector<1x32x8xbf16> to vector<32x8xbf16>
    %c0_18 = arith.constant 0 : index
    %c0_19 = arith.constant 0 : index
    %c0_20 = arith.constant 0 : index
    %37 = vector.load %arg5[%c0_18, %c0_19, %c0_20] : memref<4x32x8xbf16, #tpu.memory_space<vmem>>, vector<1x32x8xbf16>
    %38 = vector.shape_cast %37 : vector<1x32x8xbf16> to vector<32x8xbf16>
    %c0_21 = arith.constant 0 : index
    %c0_22 = arith.constant 0 : index
    %c0_23 = arith.constant 0 : index
    %39 = vector.load %arg6[%c0_21, %c0_22, %c0_23] : memref<4x8x32xbf16, #tpu.memory_space<vmem>>, vector<1x8x32xbf16>
    %40 = vector.shape_cast %39 : vector<1x8x32xbf16> to vector<8x32xbf16>
    %cst_24 = arith.constant dense<0.000000e+00> : vector<16x8xf32>
    %41 = tpu.matmul %25, %34, %cst_24 {dimension_numbers = #tpu.dot_dimension_numbers<[1], [0], [0], [1], [0, 0, 1, 1], [], []>} : vector<16x32xbf16>, vector<32x8xbf16>, vector<16x8xf32> -> vector<16x8xf32>
    %42 = vector.shape_cast %41 : vector<16x8xf32> to vector<2x8x8xf32>
    %cst_25 = arith.constant dense<0.000000e+00> : vector<16x8xf32>
    %43 = tpu.matmul %25, %36, %cst_25 {dimension_numbers = #tpu.dot_dimension_numbers<[1], [0], [0], [1], [0, 0, 1, 1], [], []>} : vector<16x32xbf16>, vector<32x8xbf16>, vector<16x8xf32> -> vector<16x8xf32>
    %44 = vector.shape_cast %43 : vector<16x8xf32> to vector<2x8x8xf32>
    %cst_26 = arith.constant dense<0.000000e+00> : vector<16x8xf32>
    %45 = tpu.matmul %25, %38, %cst_26 {dimension_numbers = #tpu.dot_dimension_numbers<[1], [0], [0], [1], [0, 0, 1, 1], [], []>} : vector<16x32xbf16>, vector<32x8xbf16>, vector<16x8xf32> -> vector<16x8xf32>
    %46 = vector.shape_cast %45 : vector<16x8xf32> to vector<2x8x8xf32>
    %47 = arith.truncf %42 : vector<2x8x8xf32> to vector<2x8x8xbf16>
    %48 = arith.truncf %44 : vector<2x8x8xf32> to vector<2x8x8xbf16>
    "tpu.trace_start"() <{level = 10 : i32, message = "bqd,bkd->bqk"}> : () -> ()
    %cst_27 = arith.constant dense<0.000000e+00> : vector<2x8x8xf32>
    %49 = tpu.matmul %47, %48, %cst_27 {dimension_numbers = #tpu.dot_dimension_numbers<[2], [2], [1], [1], [0, 0, 0, 1, 1, 1], [0], [0]>} : vector<2x8x8xbf16>, vector<2x8x8xbf16>, vector<2x8x8xf32> -> vector<2x8x8xf32>
    "tpu.trace_stop"() : () -> ()
    %50 = vector.shape_cast %31 : vector<8x8xf32> to vector<1x8x8xf32>
    %51 = vector.broadcast %50 : vector<1x8x8xf32> to vector<2x8x8xf32>
    %52 = arith.addf %49, %51 : vector<2x8x8xf32>
    %cst_28 = arith.constant dense<0xFF800000> : vector<2x8xf32>
    %53 = vector.multi_reduction <maximumf>, %52, %cst_28 [2] : vector<2x8x8xf32> to vector<2x8xf32>
    %54 = vector.shape_cast %53 : vector<2x8xf32> to vector<2x8x1xf32>
    %55 = vector.broadcast %54 : vector<2x8x1xf32> to vector<2x8x8xf32>
    %56 = arith.subf %52, %55 : vector<2x8x8xf32>
    %57 = math.exp %56 : vector<2x8x8xf32>
    %cst_29 = arith.constant dense<0.000000e+00> : vector<2x8xf32>
    %58 = vector.multi_reduction <add>, %57, %cst_29 [2] : vector<2x8x8xf32> to vector<2x8xf32>
    %59 = vector.shape_cast %58 : vector<2x8xf32> to vector<2x8x1xf32>
    %60 = tpu.reciprocal %59 {approx = true} : vector<2x8x1xf32> -> vector<2x8x1xf32>
    %61 = vector.broadcast %60 : vector<2x8x1xf32> to vector<2x8x8xf32>
    %62 = arith.mulf %57, %61 : vector<2x8x8xf32>
    %63 = arith.truncf %62 : vector<2x8x8xf32> to vector<2x8x8xbf16>
    %64 = arith.truncf %46 : vector<2x8x8xf32> to vector<2x8x8xbf16>
    "tpu.trace_start"() <{level = 10 : i32, message = "bqk,bkd->bqd"}> : () -> ()
    %cst_30 = arith.constant dense<0.000000e+00> : vector<2x8x8xf32>
    %65 = tpu.matmul %63, %64, %cst_30 {dimension_numbers = #tpu.dot_dimension_numbers<[2], [1], [1], [2], [0, 0, 0, 1, 1, 2], [0], [0]>} : vector<2x8x8xbf16>, vector<2x8x8xbf16>, vector<2x8x8xf32> -> vector<2x8x8xf32>
    "tpu.trace_stop"() : () -> ()
    %66 = vector.shape_cast %65 : vector<2x8x8xf32> to vector<16x8xf32>
    %67 = arith.truncf %66 : vector<16x8xf32> to vector<16x8xbf16>
    %cst_31 = arith.constant dense<0.000000e+00> : vector<16x32xf32>
    %68 = tpu.matmul %67, %40, %cst_31 {dimension_numbers = #tpu.dot_dimension_numbers<[1], [0], [0], [1], [0, 0, 1, 1], [], []>} : vector<16x8xbf16>, vector<8x32xbf16>, vector<16x32xf32> -> vector<16x32xf32>
    %69 = arith.addf %32, %68 : vector<16x32xf32>
    %c1 = arith.constant 1 : index
    %c0_32 = arith.constant 0 : index
    %c0_33 = arith.constant 0 : index
    %70 = vector.load %arg3[%c1, %c0_32, %c0_33] : memref<4x32x8xbf16, #tpu.memory_space<vmem>>, vector<1x32x8xbf16>
    %71 = vector.shape_cast %70 : vector<1x32x8xbf16> to vector<32x8xbf16>
    %c1_34 = arith.constant 1 : index
    %c0_35 = arith.constant 0 : index
    %c0_36 = arith.constant 0 : index
    %72 = vector.load %arg4[%c1_34, %c0_35, %c0_36] : memref<4x32x8xbf16, #tpu.memory_space<vmem>>, vector<1x32x8xbf16>
    %73 = vector.shape_cast %72 : vector<1x32x8xbf16> to vector<32x8xbf16>
    %c1_37 = arith.constant 1 : index
    %c0_38 = arith.constant 0 : index
    %c0_39 = arith.constant 0 : index
    %74 = vector.load %arg5[%c1_37, %c0_38, %c0_39] : memref<4x32x8xbf16, #tpu.memory_space<vmem>>, vector<1x32x8xbf16>
    %75 = vector.shape_cast %74 : vector<1x32x8xbf16> to vector<32x8xbf16>
    %c1_40 = arith.constant 1 : index
    %c0_41 = arith.constant 0 : index
    %c0_42 = arith.constant 0 : index
    %76 = vector.load %arg6[%c1_40, %c0_41, %c0_42] : memref<4x8x32xbf16, #tpu.memory_space<vmem>>, vector<1x8x32xbf16>
    %77 = vector.shape_cast %76 : vector<1x8x32xbf16> to vector<8x32xbf16>
    %cst_43 = arith.constant dense<0.000000e+00> : vector<16x8xf32>
    %78 = tpu.matmul %25, %71, %cst_43 {dimension_numbers = #tpu.dot_dimension_numbers<[1], [0], [0], [1], [0, 0, 1, 1], [], []>} : vector<16x32xbf16>, vector<32x8xbf16>, vector<16x8xf32> -> vector<16x8xf32>
    %79 = vector.shape_cast %78 : vector<16x8xf32> to vector<2x8x8xf32>
    %cst_44 = arith.constant dense<0.000000e+00> : vector<16x8xf32>
    %80 = tpu.matmul %25, %73, %cst_44 {dimension_numbers = #tpu.dot_dimension_numbers<[1], [0], [0], [1], [0, 0, 1, 1], [], []>} : vector<16x32xbf16>, vector<32x8xbf16>, vector<16x8xf32> -> vector<16x8xf32>
    %81 = vector.shape_cast %80 : vector<16x8xf32> to vector<2x8x8xf32>
    %cst_45 = arith.constant dense<0.000000e+00> : vector<16x8xf32>
    %82 = tpu.matmul %25, %75, %cst_45 {dimension_numbers = #tpu.dot_dimension_numbers<[1], [0], [0], [1], [0, 0, 1, 1], [], []>} : vector<16x32xbf16>, vector<32x8xbf16>, vector<16x8xf32> -> vector<16x8xf32>
    %83 = vector.shape_cast %82 : vector<16x8xf32> to vector<2x8x8xf32>
    %84 = arith.truncf %79 : vector<2x8x8xf32> to vector<2x8x8xbf16>
    %85 = arith.truncf %81 : vector<2x8x8xf32> to vector<2x8x8xbf16>
    "tpu.trace_start"() <{level = 10 : i32, message = "bqd,bkd->bqk"}> : () -> ()
    %cst_46 = arith.constant dense<0.000000e+00> : vector<2x8x8xf32>
    %86 = tpu.matmul %84, %85, %cst_46 {dimension_numbers = #tpu.dot_dimension_numbers<[2], [2], [1], [1], [0, 0, 0, 1, 1, 1], [0], [0]>} : vector<2x8x8xbf16>, vector<2x8x8xbf16>, vector<2x8x8xf32> -> vector<2x8x8xf32>
    "tpu.trace_stop"() : () -> ()
    %87 = vector.shape_cast %31 : vector<8x8xf32> to vector<1x8x8xf32>
    %88 = vector.broadcast %87 : vector<1x8x8xf32> to vector<2x8x8xf32>
    %89 = arith.addf %86, %88 : vector<2x8x8xf32>
    %cst_47 = arith.constant dense<0xFF800000> : vector<2x8xf32>
    %90 = vector.multi_reduction <maximumf>, %89, %cst_47 [2] : vector<2x8x8xf32> to vector<2x8xf32>
    %91 = vector.shape_cast %90 : vector<2x8xf32> to vector<2x8x1xf32>
    %92 = vector.broadcast %91 : vector<2x8x1xf32> to vector<2x8x8xf32>
    %93 = arith.subf %89, %92 : vector<2x8x8xf32>
    %94 = math.exp %93 : vector<2x8x8xf32>
    %cst_48 = arith.constant dense<0.000000e+00> : vector<2x8xf32>
    %95 = vector.multi_reduction <add>, %94, %cst_48 [2] : vector<2x8x8xf32> to vector<2x8xf32>
    %96 = vector.shape_cast %95 : vector<2x8xf32> to vector<2x8x1xf32>
    %97 = tpu.reciprocal %96 {approx = true} : vector<2x8x1xf32> -> vector<2x8x1xf32>
    %98 = vector.broadcast %97 : vector<2x8x1xf32> to vector<2x8x8xf32>
    %99 = arith.mulf %94, %98 : vector<2x8x8xf32>
    %100 = arith.truncf %99 : vector<2x8x8xf32> to vector<2x8x8xbf16>
    %101 = arith.truncf %83 : vector<2x8x8xf32> to vector<2x8x8xbf16>
    "tpu.trace_start"() <{level = 10 : i32, message = "bqk,bkd->bqd"}> : () -> ()
    %cst_49 = arith.constant dense<0.000000e+00> : vector<2x8x8xf32>
    %102 = tpu.matmul %100, %101, %cst_49 {dimension_numbers = #tpu.dot_dimension_numbers<[2], [1], [1], [2], [0, 0, 0, 1, 1, 2], [0], [0]>} : vector<2x8x8xbf16>, vector<2x8x8xbf16>, vector<2x8x8xf32> -> vector<2x8x8xf32>
    "tpu.trace_stop"() : () -> ()
    %103 = vector.shape_cast %102 : vector<2x8x8xf32> to vector<16x8xf32>
    %104 = arith.truncf %103 : vector<16x8xf32> to vector<16x8xbf16>
    %cst_50 = arith.constant dense<0.000000e+00> : vector<16x32xf32>
    %105 = tpu.matmul %104, %77, %cst_50 {dimension_numbers = #tpu.dot_dimension_numbers<[1], [0], [0], [1], [0, 0, 1, 1], [], []>} : vector<16x8xbf16>, vector<8x32xbf16>, vector<16x32xf32> -> vector<16x32xf32>
    %106 = arith.addf %69, %105 : vector<16x32xf32>
    %c2 = arith.constant 2 : index
    %c0_51 = arith.constant 0 : index
    %c0_52 = arith.constant 0 : index
    %107 = vector.load %arg3[%c2, %c0_51, %c0_52] : memref<4x32x8xbf16, #tpu.memory_space<vmem>>, vector<1x32x8xbf16>
    %108 = vector.shape_cast %107 : vector<1x32x8xbf16> to vector<32x8xbf16>
    %c2_53 = arith.constant 2 : index
    %c0_54 = arith.constant 0 : index
    %c0_55 = arith.constant 0 : index
    %109 = vector.load %arg4[%c2_53, %c0_54, %c0_55] : memref<4x32x8xbf16, #tpu.memory_space<vmem>>, vector<1x32x8xbf16>
    %110 = vector.shape_cast %109 : vector<1x32x8xbf16> to vector<32x8xbf16>
    %c2_56 = arith.constant 2 : index
    %c0_57 = arith.constant 0 : index
    %c0_58 = arith.constant 0 : index
    %111 = vector.load %arg5[%c2_56, %c0_57, %c0_58] : memref<4x32x8xbf16, #tpu.memory_space<vmem>>, vector<1x32x8xbf16>
    %112 = vector.shape_cast %111 : vector<1x32x8xbf16> to vector<32x8xbf16>
    %c2_59 = arith.constant 2 : index
    %c0_60 = arith.constant 0 : index
    %c0_61 = arith.constant 0 : index
    %113 = vector.load %arg6[%c2_59, %c0_60, %c0_61] : memref<4x8x32xbf16, #tpu.memory_space<vmem>>, vector<1x8x32xbf16>
    %114 = vector.shape_cast %113 : vector<1x8x32xbf16> to vector<8x32xbf16>
    %cst_62 = arith.constant dense<0.000000e+00> : vector<16x8xf32>
    %115 = tpu.matmul %25, %108, %cst_62 {dimension_numbers = #tpu.dot_dimension_numbers<[1], [0], [0], [1], [0, 0, 1, 1], [], []>} : vector<16x32xbf16>, vector<32x8xbf16>, vector<16x8xf32> -> vector<16x8xf32>
    %116 = vector.shape_cast %115 : vector<16x8xf32> to vector<2x8x8xf32>
    %cst_63 = arith.constant dense<0.000000e+00> : vector<16x8xf32>
    %117 = tpu.matmul %25, %110, %cst_63 {dimension_numbers = #tpu.dot_dimension_numbers<[1], [0], [0], [1], [0, 0, 1, 1], [], []>} : vector<16x32xbf16>, vector<32x8xbf16>, vector<16x8xf32> -> vector<16x8xf32>
    %118 = vector.shape_cast %117 : vector<16x8xf32> to vector<2x8x8xf32>
    %cst_64 = arith.constant dense<0.000000e+00> : vector<16x8xf32>
    %119 = tpu.matmul %25, %112, %cst_64 {dimension_numbers = #tpu.dot_dimension_numbers<[1], [0], [0], [1], [0, 0, 1, 1], [], []>} : vector<16x32xbf16>, vector<32x8xbf16>, vector<16x8xf32> -> vector<16x8xf32>
    %120 = vector.shape_cast %119 : vector<16x8xf32> to vector<2x8x8xf32>
    %121 = arith.truncf %116 : vector<2x8x8xf32> to vector<2x8x8xbf16>
    %122 = arith.truncf %118 : vector<2x8x8xf32> to vector<2x8x8xbf16>
    "tpu.trace_start"() <{level = 10 : i32, message = "bqd,bkd->bqk"}> : () -> ()
    %cst_65 = arith.constant dense<0.000000e+00> : vector<2x8x8xf32>
    %123 = tpu.matmul %121, %122, %cst_65 {dimension_numbers = #tpu.dot_dimension_numbers<[2], [2], [1], [1], [0, 0, 0, 1, 1, 1], [0], [0]>} : vector<2x8x8xbf16>, vector<2x8x8xbf16>, vector<2x8x8xf32> -> vector<2x8x8xf32>
    "tpu.trace_stop"() : () -> ()
    %124 = vector.shape_cast %31 : vector<8x8xf32> to vector<1x8x8xf32>
    %125 = vector.broadcast %124 : vector<1x8x8xf32> to vector<2x8x8xf32>
    %126 = arith.addf %123, %125 : vector<2x8x8xf32>
    %cst_66 = arith.constant dense<0xFF800000> : vector<2x8xf32>
    %127 = vector.multi_reduction <maximumf>, %126, %cst_66 [2] : vector<2x8x8xf32> to vector<2x8xf32>
    %128 = vector.shape_cast %127 : vector<2x8xf32> to vector<2x8x1xf32>
    %129 = vector.broadcast %128 : vector<2x8x1xf32> to vector<2x8x8xf32>
    %130 = arith.subf %126, %129 : vector<2x8x8xf32>
    %131 = math.exp %130 : vector<2x8x8xf32>
    %cst_67 = arith.constant dense<0.000000e+00> : vector<2x8xf32>
    %132 = vector.multi_reduction <add>, %131, %cst_67 [2] : vector<2x8x8xf32> to vector<2x8xf32>
    %133 = vector.shape_cast %132 : vector<2x8xf32> to vector<2x8x1xf32>
    %134 = tpu.reciprocal %133 {approx = true} : vector<2x8x1xf32> -> vector<2x8x1xf32>
    %135 = vector.broadcast %134 : vector<2x8x1xf32> to vector<2x8x8xf32>
    %136 = arith.mulf %131, %135 : vector<2x8x8xf32>
    %137 = arith.truncf %136 : vector<2x8x8xf32> to vector<2x8x8xbf16>
    %138 = arith.truncf %120 : vector<2x8x8xf32> to vector<2x8x8xbf16>
    "tpu.trace_start"() <{level = 10 : i32, message = "bqk,bkd->bqd"}> : () -> ()
    %cst_68 = arith.constant dense<0.000000e+00> : vector<2x8x8xf32>
    %139 = tpu.matmul %137, %138, %cst_68 {dimension_numbers = #tpu.dot_dimension_numbers<[2], [1], [1], [2], [0, 0, 0, 1, 1, 2], [0], [0]>} : vector<2x8x8xbf16>, vector<2x8x8xbf16>, vector<2x8x8xf32> -> vector<2x8x8xf32>
    "tpu.trace_stop"() : () -> ()
    %140 = vector.shape_cast %139 : vector<2x8x8xf32> to vector<16x8xf32>
    %141 = arith.truncf %140 : vector<16x8xf32> to vector<16x8xbf16>
    %cst_69 = arith.constant dense<0.000000e+00> : vector<16x32xf32>
    %142 = tpu.matmul %141, %114, %cst_69 {dimension_numbers = #tpu.dot_dimension_numbers<[1], [0], [0], [1], [0, 0, 1, 1], [], []>} : vector<16x8xbf16>, vector<8x32xbf16>, vector<16x32xf32> -> vector<16x32xf32>
    %143 = arith.addf %106, %142 : vector<16x32xf32>
    %c3 = arith.constant 3 : index
    %c0_70 = arith.constant 0 : index
    %c0_71 = arith.constant 0 : index
    %144 = vector.load %arg3[%c3, %c0_70, %c0_71] : memref<4x32x8xbf16, #tpu.memory_space<vmem>>, vector<1x32x8xbf16>
    %145 = vector.shape_cast %144 : vector<1x32x8xbf16> to vector<32x8xbf16>
    %c3_72 = arith.constant 3 : index
    %c0_73 = arith.constant 0 : index
    %c0_74 = arith.constant 0 : index
    %146 = vector.load %arg4[%c3_72, %c0_73, %c0_74] : memref<4x32x8xbf16, #tpu.memory_space<vmem>>, vector<1x32x8xbf16>
    %147 = vector.shape_cast %146 : vector<1x32x8xbf16> to vector<32x8xbf16>
    %c3_75 = arith.constant 3 : index
    %c0_76 = arith.constant 0 : index
    %c0_77 = arith.constant 0 : index
    %148 = vector.load %arg5[%c3_75, %c0_76, %c0_77] : memref<4x32x8xbf16, #tpu.memory_space<vmem>>, vector<1x32x8xbf16>
    %149 = vector.shape_cast %148 : vector<1x32x8xbf16> to vector<32x8xbf16>
    %c3_78 = arith.constant 3 : index
    %c0_79 = arith.constant 0 : index
    %c0_80 = arith.constant 0 : index
    %150 = vector.load %arg6[%c3_78, %c0_79, %c0_80] : memref<4x8x32xbf16, #tpu.memory_space<vmem>>, vector<1x8x32xbf16>
    %151 = vector.shape_cast %150 : vector<1x8x32xbf16> to vector<8x32xbf16>
    %cst_81 = arith.constant dense<0.000000e+00> : vector<16x8xf32>
    %152 = tpu.matmul %25, %145, %cst_81 {dimension_numbers = #tpu.dot_dimension_numbers<[1], [0], [0], [1], [0, 0, 1, 1], [], []>} : vector<16x32xbf16>, vector<32x8xbf16>, vector<16x8xf32> -> vector<16x8xf32>
    %153 = vector.shape_cast %152 : vector<16x8xf32> to vector<2x8x8xf32>
    %cst_82 = arith.constant dense<0.000000e+00> : vector<16x8xf32>
    %154 = tpu.matmul %25, %147, %cst_82 {dimension_numbers = #tpu.dot_dimension_numbers<[1], [0], [0], [1], [0, 0, 1, 1], [], []>} : vector<16x32xbf16>, vector<32x8xbf16>, vector<16x8xf32> -> vector<16x8xf32>
    %155 = vector.shape_cast %154 : vector<16x8xf32> to vector<2x8x8xf32>
    %cst_83 = arith.constant dense<0.000000e+00> : vector<16x8xf32>
    %156 = tpu.matmul %25, %149, %cst_83 {dimension_numbers = #tpu.dot_dimension_numbers<[1], [0], [0], [1], [0, 0, 1, 1], [], []>} : vector<16x32xbf16>, vector<32x8xbf16>, vector<16x8xf32> -> vector<16x8xf32>
    %157 = vector.shape_cast %156 : vector<16x8xf32> to vector<2x8x8xf32>
    %158 = arith.truncf %153 : vector<2x8x8xf32> to vector<2x8x8xbf16>
    %159 = arith.truncf %155 : vector<2x8x8xf32> to vector<2x8x8xbf16>
    "tpu.trace_start"() <{level = 10 : i32, message = "bqd,bkd->bqk"}> : () -> ()
    %cst_84 = arith.constant dense<0.000000e+00> : vector<2x8x8xf32>
    %160 = tpu.matmul %158, %159, %cst_84 {dimension_numbers = #tpu.dot_dimension_numbers<[2], [2], [1], [1], [0, 0, 0, 1, 1, 1], [0], [0]>} : vector<2x8x8xbf16>, vector<2x8x8xbf16>, vector<2x8x8xf32> -> vector<2x8x8xf32>
    "tpu.trace_stop"() : () -> ()
    %161 = vector.shape_cast %31 : vector<8x8xf32> to vector<1x8x8xf32>
    %162 = vector.broadcast %161 : vector<1x8x8xf32> to vector<2x8x8xf32>
    %163 = arith.addf %160, %162 : vector<2x8x8xf32>
    %cst_85 = arith.constant dense<0xFF800000> : vector<2x8xf32>
    %164 = vector.multi_reduction <maximumf>, %163, %cst_85 [2] : vector<2x8x8xf32> to vector<2x8xf32>
    %165 = vector.shape_cast %164 : vector<2x8xf32> to vector<2x8x1xf32>
    %166 = vector.broadcast %165 : vector<2x8x1xf32> to vector<2x8x8xf32>
    %167 = arith.subf %163, %166 : vector<2x8x8xf32>
    %168 = math.exp %167 : vector<2x8x8xf32>
    %cst_86 = arith.constant dense<0.000000e+00> : vector<2x8xf32>
    %169 = vector.multi_reduction <add>, %168, %cst_86 [2] : vector<2x8x8xf32> to vector<2x8xf32>
    %170 = vector.shape_cast %169 : vector<2x8xf32> to vector<2x8x1xf32>
    %171 = tpu.reciprocal %170 {approx = true} : vector<2x8x1xf32> -> vector<2x8x1xf32>
    %172 = vector.broadcast %171 : vector<2x8x1xf32> to vector<2x8x8xf32>
    %173 = arith.mulf %168, %172 : vector<2x8x8xf32>
    %174 = arith.truncf %173 : vector<2x8x8xf32> to vector<2x8x8xbf16>
    %175 = arith.truncf %157 : vector<2x8x8xf32> to vector<2x8x8xbf16>
    "tpu.trace_start"() <{level = 10 : i32, message = "bqk,bkd->bqd"}> : () -> ()
    %cst_87 = arith.constant dense<0.000000e+00> : vector<2x8x8xf32>
    %176 = tpu.matmul %174, %175, %cst_87 {dimension_numbers = #tpu.dot_dimension_numbers<[2], [1], [1], [2], [0, 0, 0, 1, 1, 2], [0], [0]>} : vector<2x8x8xbf16>, vector<2x8x8xbf16>, vector<2x8x8xf32> -> vector<2x8x8xf32>
    "tpu.trace_stop"() : () -> ()
    %177 = vector.shape_cast %176 : vector<2x8x8xf32> to vector<16x8xf32>
    %178 = arith.truncf %177 : vector<16x8xf32> to vector<16x8xbf16>
    %cst_88 = arith.constant dense<0.000000e+00> : vector<16x32xf32>
    %179 = tpu.matmul %178, %151, %cst_88 {dimension_numbers = #tpu.dot_dimension_numbers<[1], [0], [0], [1], [0, 0, 1, 1], [], []>} : vector<16x8xbf16>, vector<8x32xbf16>, vector<16x32xf32> -> vector<16x32xf32>
    %180 = arith.addf %143, %179 : vector<16x32xf32>
    %c0_89 = arith.constant 0 : index
    %c0_90 = arith.constant 0 : index
    %181 = vector.load %arg7[%c0_89, %c0_90] : memref<1x32xf32, #tpu.memory_space<vmem>>, vector<1x32xf32>
    %182 = vector.broadcast %181 : vector<1x32xf32> to vector<16x32xf32>
    %183 = arith.addf %180, %182 : vector<16x32xf32>
    %184 = arith.addf %0, %183 : vector<16x32xf32>
    %c0_91 = arith.constant 0 : index
    %c0_92 = arith.constant 0 : index
    %185 = vector.load %arg8[%c0_91, %c0_92] : memref<1x32xf32, #tpu.memory_space<vmem>>, vector<1x32xf32>
    %c0_93 = arith.constant 0 : index
    %c0_94 = arith.constant 0 : index
    %186 = vector.load %arg9[%c0_93, %c0_94] : memref<1x32xf32, #tpu.memory_space<vmem>>, vector<1x32xf32>
    %cst_95 = arith.constant dense<0.000000e+00> : vector<16xf32>
    %187 = vector.multi_reduction <add>, %184, %cst_95 [1] : vector<16x32xf32> to vector<16xf32>
    %188 = vector.shape_cast %187 : vector<16xf32> to vector<16x1xf32>
    %cst_96 = arith.constant 3.200000e+01 : f32
    %189 = vector.broadcast %cst_96 : f32 to vector<16x1xf32>
    %190 = arith.divf %188, %189 : vector<16x1xf32>
    %191 = vector.broadcast %190 : vector<16x1xf32> to vector<16x32xf32>
    %192 = arith.subf %184, %191 : vector<16x32xf32>
    %193 = arith.mulf %192, %192 : vector<16x32xf32>
    %cst_97 = arith.constant dense<0.000000e+00> : vector<16xf32>
    %194 = vector.multi_reduction <add>, %193, %cst_97 [1] : vector<16x32xf32> to vector<16xf32>
    %195 = vector.shape_cast %194 : vector<16xf32> to vector<16x1xf32>
    %cst_98 = arith.constant 3.200000e+01 : f32
    %196 = vector.broadcast %cst_98 : f32 to vector<16x1xf32>
    %197 = arith.divf %195, %196 : vector<16x1xf32>
    %198 = vector.broadcast %190 : vector<16x1xf32> to vector<16x32xf32>
    %199 = arith.subf %184, %198 : vector<16x32xf32>
    %cst_99 = arith.constant 9.99999974E-6 : f32
    %200 = vector.broadcast %cst_99 : f32 to vector<16x1xf32>
    %201 = arith.addf %197, %200 : vector<16x1xf32>
    %202 = math.rsqrt %201 : vector<16x1xf32>
    %203 = vector.broadcast %202 : vector<16x1xf32> to vector<16x32xf32>
    %204 = arith.mulf %199, %203 : vector<16x32xf32>
    %205 = vector.broadcast %185 : vector<1x32xf32> to vector<16x32xf32>
    %206 = arith.mulf %204, %205 : vector<16x32xf32>
    %207 = vector.broadcast %186 : vector<1x32xf32> to vector<16x32xf32>
    %208 = arith.addf %206, %207 : vector<16x32xf32>
    %209 = arith.truncf %208 : vector<16x32xf32> to vector<16x32xbf16>
    %c0_100 = arith.constant 0 : index
    %c0_101 = arith.constant 0 : index
    %210 = vector.load %arg10[%c0_100, %c0_101] : memref<32x128xbf16, #tpu.memory_space<vmem>>, vector<32x128xbf16>
    %cst_102 = arith.constant dense<0.000000e+00> : vector<16x128xf32>
    %211 = tpu.matmul %209, %210, %cst_102 {dimension_numbers = #tpu.dot_dimension_numbers<[1], [0], [0], [1], [0, 0, 1, 1], [], []>} : vector<16x32xbf16>, vector<32x128xbf16>, vector<16x128xf32> -> vector<16x128xf32>
    %c0_103 = arith.constant 0 : index
    %c0_104 = arith.constant 0 : index
    %212 = vector.load %arg11[%c0_103, %c0_104] : memref<1x128xf32, #tpu.memory_space<vmem>>, vector<1x128xf32>
    %213 = vector.broadcast %212 : vector<1x128xf32> to vector<16x128xf32>
    %214 = arith.addf %211, %213 : vector<16x128xf32>
    %cst_105 = arith.constant 0.000000e+00 : f32
    %215 = vector.broadcast %cst_105 : f32 to vector<16x128xf32>
    %216 = arith.maximumf %214, %215 : vector<16x128xf32>
    %217 = arith.truncf %216 : vector<16x128xf32> to vector<16x128xbf16>
    %c0_106 = arith.constant 0 : index
    %c0_107 = arith.constant 0 : index
    %218 = vector.load %arg12[%c0_106, %c0_107] : memref<128x32xbf16, #tpu.memory_space<vmem>>, vector<128x32xbf16>
    %cst_108 = arith.constant dense<0.000000e+00> : vector<16x32xf32>
    %219 = tpu.matmul %217, %218, %cst_108 {dimension_numbers = #tpu.dot_dimension_numbers<[1], [0], [0], [1], [0, 0, 1, 1], [], []>} : vector<16x128xbf16>, vector<128x32xbf16>, vector<16x32xf32> -> vector<16x32xf32>
    %c0_109 = arith.constant 0 : index
    %c0_110 = arith.constant 0 : index
    %220 = vector.load %arg13[%c0_109, %c0_110] : memref<1x32xf32, #tpu.memory_space<vmem>>, vector<1x32xf32>
    %221 = vector.broadcast %220 : vector<1x32xf32> to vector<16x32xf32>
    %222 = arith.addf %219, %221 : vector<16x32xf32>
    %223 = arith.addf %184, %222 : vector<16x32xf32>
    %c0_111 = arith.constant 0 : index
    %c0_112 = arith.constant 0 : index
    %224 = vector.load %arg14[%c0_111, %c0_112] : memref<16x32xf32, #tpu.memory_space<vmem>>, vector<16x32xf32>
    tpu.vector_store %arg14[%c0_111, %c0_112], %223 {strides = array<i32>} : memref<16x32xf32, #tpu.memory_space<vmem>>, vector<16x32xf32>,
    return
  }
}

</mosaic_0001>

<llo_original>
// kernel: tpu_custom_call.1
$region0: #{tpu_custom_call.1}
  #allocation0 [shape = 'u32[]', space=smem, size = 0x4, offset = 0x4, fixed_abs, tag = 'smem constant byte address 0x4 - core index']
  #allocation1 [shape = 'u32[144,128]{1,0:T(1,128)}', space=vmem, size = 0x12000, scoped, tag = 'internal scratch']
  %s0 = inlined_call_operand.vmem [shape: f32[16,32], index: 0, kind: input, shape index: {}]
  %s1 = inlined_call_operand.vmem [shape: f32[1,32], index: 1, kind: input, shape index: {}]
  %s2 = inlined_call_operand.vmem [shape: f32[1,32], index: 2, kind: input, shape index: {}]
  %s3 = inlined_call_operand.vmem [shape: bf16[4,32,8], index: 3, kind: input, shape index: {}]
  %s4 = inlined_call_operand.vmem [shape: bf16[4,32,8], index: 4, kind: input, shape index: {}]
  %s5 = inlined_call_operand.vmem [shape: bf16[4,32,8], index: 5, kind: input, shape index: {}]
  %s6 = inlined_call_operand.vmem [shape: bf16[4,8,32], index: 6, kind: input, shape index: {}]
  %s7 = inlined_call_operand.vmem [shape: f32[1,32], index: 7, kind: input, shape index: {}]
  %s8 = inlined_call_operand.vmem [shape: f32[1,32], index: 8, kind: input, shape index: {}]
  %s9 = inlined_call_operand.vmem [shape: f32[1,32], index: 9, kind: input, shape index: {}]
  %s10 = inlined_call_operand.vmem [shape: bf16[32,128], index: 10, kind: input, shape index: {}]
  %s11 = inlined_call_operand.vmem [shape: f32[1,128], index: 11, kind: input, shape index: {}]
  %s12 = inlined_call_operand.vmem [shape: bf16[128,32], index: 12, kind: input, shape index: {}]
  %s13 = inlined_call_operand.vmem [shape: f32[1,32], index: 13, kind: input, shape index: {}]
  %s14 = inlined_call_operand.hbm [shape: f32[16,32], index: 14, kind: output, shape index: {}]
  %s15 = sld [smem:[#allocation0]]
  $region66: #{tpu_custom_call.1} parent=0
    _
  %s17 = ssub.s32 1, %s15
  %s18 = scalar_select 0, %s17, %s15
  $region1: #{tpu_custom_call.1} parent=0
    #allocation2 [shape = 'u8[8192]{0}', space=vmem, size = 0x2000, scoped, tag = 'output window, operand 0, single buffered']
    #allocation3 [shape = 's32[1]{0}', space=sflag, size = 0x4, scoped, tag = 'scoped memory for tpu_custom_call.1']
    %19 = vsyncpa [#allocation3], 0
    // Predicated region
    $region2: #{tpu_custom_call.1} parent=1 // pred_check
      _
    $region3: #{tpu_custom_call.1} parent=1 // pred_check_branch
      %21 = sbr.rel (0) target = $region5
    $region4: #{tpu_custom_call.1} parent=1 // pred_region
      _
    $region5: #{tpu_custom_call.1} parent=1 // pred_fallthru
      _
    // Predicated region
    $region6: #{tpu_custom_call.1} parent=1 // pred_check
      _
    $region7: #{tpu_custom_call.1} parent=1 // pred_check_branch
      %23 = sbr.rel (0) target = $region9
    $region8: #{tpu_custom_call.1} parent=1 // pred_region
      _
    $region9: #{tpu_custom_call.1} parent=1 // pred_fallthru
      _
    // Predicated region
    $region10: #{tpu_custom_call.1} parent=1 // pred_check
      _
    $region11: #{tpu_custom_call.1} parent=1 // pred_check_branch
      %25 = sbr.rel (0) target = $region13
    $region12: #{tpu_custom_call.1} parent=1 // pred_region
      _
    $region13: #{tpu_custom_call.1} parent=1 // pred_fallthru
      _
    // Predicated region
    $region14: #{tpu_custom_call.1} parent=1 // pred_check
      _
    $region15: #{tpu_custom_call.1} parent=1 // pred_check_branch
      %27 = sbr.rel (0) target = $region17
    $region16: #{tpu_custom_call.1} parent=1 // pred_region
      _
    $region17: #{tpu_custom_call.1} parent=1 // pred_fallthru
      _
    // Predicated region
    $region18: #{tpu_custom_call.1} parent=1 // pred_check
      _
    $region19: #{tpu_custom_call.1} parent=1 // pred_check_branch
      %29 = sbr.rel (0) target = $region21
    $region20: #{tpu_custom_call.1} parent=1 // pred_region
      _
    $region21: #{tpu_custom_call.1} parent=1 // pred_fallthru
      _
    // Predicated region
    $region22: #{tpu_custom_call.1} parent=1 // pred_check
      _
    $region23: #{tpu_custom_call.1} parent=1 // pred_check_branch
      %31 = sbr.rel (0) target = $region25
    $region24: #{tpu_custom_call.1} parent=1 // pred_region
      _
    $region25: #{tpu_custom_call.1} parent=1 // pred_fallthru
      _
    // Predicated region
    $region26: #{tpu_custom_call.1} parent=1 // pred_check
      _
    $region27: #{tpu_custom_call.1} parent=1 // pred_check_branch
      %33 = sbr.rel (0) target = $region29
    $region28: #{tpu_custom_call.1} parent=1 // pred_region
      _
    $region29: #{tpu_custom_call.1} parent=1 // pred_fallthru
      _
    // Predicated region
    $region30: #{tpu_custom_call.1} parent=1 // pred_check
      _
    $region31: #{tpu_custom_call.1} parent=1 // pred_check_branch
      %35 = sbr.rel (0) target = $region33
    $region32: #{tpu_custom_call.1} parent=1 // pred_region
      _
    $region33: #{tpu_custom_call.1} parent=1 // pred_fallthru
      _
    // Predicated region
    $region34: #{tpu_custom_call.1} parent=1 // pred_check
      _
    $region35: #{tpu_custom_call.1} parent=1 // pred_check_branch
      %37 = sbr.rel (0) target = $region37
    $region36: #{tpu_custom_call.1} parent=1 // pred_region
      _
    $region37: #{tpu_custom_call.1} parent=1 // pred_fallthru
      _
    // Predicated region
    $region38: #{tpu_custom_call.1} parent=1 // pred_check
      _
    $region39: #{tpu_custom_call.1} parent=1 // pred_check_branch
      %39 = sbr.rel (0) target = $region41
    $region40: #{tpu_custom_call.1} parent=1 // pred_region
      _
    $region41: #{tpu_custom_call.1} parent=1 // pred_fallthru
      _
    // Predicated region
    $region42: #{tpu_custom_call.1} parent=1 // pred_check
      _
    $region43: #{tpu_custom_call.1} parent=1 // pred_check_branch
      %41 = sbr.rel (0) target = $region45
    $region44: #{tpu_custom_call.1} parent=1 // pred_region
      _
    $region45: #{tpu_custom_call.1} parent=1 // pred_fallthru
      _
    // Predicated region
    $region46: #{tpu_custom_call.1} parent=1 // pred_check
      _
    $region47: #{tpu_custom_call.1} parent=1 // pred_check_branch
      %43 = sbr.rel (0) target = $region49
    $region48: #{tpu_custom_call.1} parent=1 // pred_region
      _
    $region49: #{tpu_custom_call.1} parent=1 // pred_fallthru
      _
    // Predicated region
    $region50: #{tpu_custom_call.1} parent=1 // pred_check
      _
    $region51: #{tpu_custom_call.1} parent=1 // pred_check_branch
      %45 = sbr.rel (0) target = $region53
    $region52: #{tpu_custom_call.1} parent=1 // pred_region
      _
    $region53: #{tpu_custom_call.1} parent=1 // pred_fallthru
      _
    // Predicated region
    $region54: #{tpu_custom_call.1} parent=1 // pred_check
      _
    $region55: #{tpu_custom_call.1} parent=1 // pred_check_branch
      %47 = sbr.rel (0) target = $region57
    $region56: #{tpu_custom_call.1} parent=1 // pred_region
      _
    $region57: #{tpu_custom_call.1} parent=1 // pred_fallthru
      _
    %v49 = vld [vmem:[%s0] sm:$0xff]
    %v50 = vld [vmem:[%s0 + $0x8] sm:$0xff]
    %v51 = vld [vmem:[%s1] sm:$0x1]
    %v52 = vld [vmem:[%s2] sm:$0x1]
    %vm53 = vcmask 261120
    %v54 = vsel %vm53, %v49, 0.0
    %55 = vadd.xlane.f32.xlu0 %v54
    %v56 = vpop.xlane.xlu0 %55
    %v57 = vsel %vm53, %v50, 0.0
    %58 = vadd.xlane.f32.xlu0 %v57
    %v59 = vpop.xlane.xlu0 %58
    %v60 = vrcp.pop 32.0
    %v61 = vmul.f32 %v56, %v60
    %v62 = vmul.f32 %v59, %v60
    %v63 = vsub.f32 %v49, %v61
    %v64 = vsub.f32 %v50, %v62
    %v65 = vmul.f32 %v63, %v63
    %v66 = vmul.f32 %v64, %v64
    %v67 = vsel %vm53, %v65, 0.0
    %68 = vadd.xlane.f32.xlu0 %v67
    %v69 = vpop.xlane.xlu0 %68
    %v70 = vsel %vm53, %v66, 0.0
    %71 = vadd.xlane.f32.xlu0 %v70
    %v72 = vpop.xlane.xlu0 %71
    %v73 = vmul.f32 %v69, %v60
    %v74 = vmul.f32 %v72, %v60
    %v75 = vadd.f32 %v73, 1e-05
    %v76 = vadd.f32 %v74, 1e-05
    %v77 = vrsqrt.pop %v75
    %v78 = vrsqrt.pop %v76
    %v79 = vmul.f32 %v63, %v77
    %v80 = vmul.f32 %v64, %v78
    %v82 = vlaneseq
    %v83 = vshrl.u32 %v82, 7
    %v84 = vsub.s32 0, %v83
    %v85 = vrot.slane %v51, %v84
    %v87 = vmul.f32 %v79, %v85
    %v88 = vmul.f32 %v80, %v85
    %v90 = vlaneseq
    %v91 = vshrl.u32 %v90, 7
    %v92 = vsub.s32 0, %v91
    %v93 = vrot.slane %v52, %v92
    %v95 = vadd.f32 %v87, %v93
    %v96 = vadd.f32 %v88, %v93
    %v97 = vpack.c.bf16 %v96, %v95
    %v98 = vlaneseq
    %v99 = vshrl.u32 %v98, 7
    %v100 = vlaneseq
    %v101 = vand.u32 %v100, 127
    %vm102 = vcmp.ge.s32.totalorder %v99, %v101
    %v103 = vsel %vm102, 0.0, -1e+30
    %v104 = vld [vmem:[%s3] sm:$0xf]
    %v105 = vld [vmem:[%s3 + $0x4] sm:$0xf]
    %v106 = vld [vmem:[%s3 + $0x8] sm:$0xf]
    %v107 = vld [vmem:[%s3 + $0xc] sm:$0xf]
    %v108 = vld [vmem:[%s4] sm:$0xf]
    %v109 = vld [vmem:[%s4 + $0x4] sm:$0xf]
    %v110 = vld [vmem:[%s4 + $0x8] sm:$0xf]
    %v111 = vld [vmem:[%s4 + $0xc] sm:$0xf]
    %v112 = vld [vmem:[%s5] sm:$0xf]
    %v113 = vld [vmem:[%s5 + $0x4] sm:$0xf]
    %v114 = vld [vmem:[%s5 + $0x8] sm:$0xf]
    %v115 = vld [vmem:[%s5 + $0xc] sm:$0xf]
    %v116 = vld [vmem:[%s6] sm:$0xf]
    %v121 = vunpack.c.l.b16 %v104
    %v122 = vunpack.c.l.b16 %v105
    %v123 = vunpack.c.l.b16 %v106
    %v124 = vunpack.c.l.b16 %v107
    %v125 = vpack.c.b16 %v122, %v121
    %v126 = vpack.c.b16 %v124, %v123
    %v130 = vsel %vm53, %v97, 0
    %132 = vmatprep.subr.bf16.mxu0 0
    %133 = vmatpush1.bf16.msra.mxu0 0
    %134 = vmatprep.subr.bf16.mxu0 0
    %135 = vmatpush1.bf16.msra.mxu0 0
    %136 = vmatprep.subr.bf16.mxu0 0
    %137 = vmatpush1.bf16.msra.mxu0 0
    %138 = vmatprep.subr.bf16.mxu0 0
    %139 = vmatpush1.bf16.msra.mxu0 0
    %140 = vmatprep.subr.bf16.mxu0 0
    %141 = vmatpush1.bf16.msra.mxu0 0
    %142 = vmatprep.subr.bf16.mxu0 0
    %143 = vmatpush1.bf16.msra.mxu0 0
    %144 = vmatprep.subr.bf16.mxu0 0
    %145 = vmatpush1.bf16.msra.mxu0 %v126
    %146 = vmatprep.subr.bf16.mxu0 0
    %147 = vmatpush1.bf16.msra.mxu0 %v125
    %148 = vmatprep.subr.bf16.mxu0 0
    %149 = vmatpush2.bf16.msra.mxu0 0
    %150 = vmatprep.subr.bf16.mxu0 0
    %151 = vmatpush2.bf16.msra.mxu0 0
    %152 = vmatprep.subr.bf16.mxu0 0
    %153 = vmatpush2.bf16.msra.mxu0 0
    %154 = vmatprep.subr.bf16.mxu0 0
    %155 = vmatpush2.bf16.msra.mxu0 0
    %156 = vmatprep.subr.bf16.mxu0 0
    %157 = vmatpush2.bf16.msra.mxu0 0
    %158 = vmatprep.subr.bf16.mxu0 0
    %159 = vmatpush2.bf16.msra.mxu0 0
    %160 = vmatprep.subr.bf16.mxu0 0
    %161 = vmatpush2.bf16.msra.mxu0 0
    %162 = vmatprep.subr.bf16.mxu0 0
    %163 = vmatpush2.bf16.msra.mxu0 0
    %164 = vmatprep.mubr.bf16.mxu0 0
    %165 = vmatmul.mubr.bf16.gmra.mxu0 %v130
    %v166 = vpop.f32.mrf.mxu0
    %v167 = vadd.f32 0.0, %v166
    %v168 = vpop.f32.mrf.mxu0
    %v169 = vpop.f32.mrf.mxu0
    %v170 = vadd.f32 0.0, %v169
    %v171 = vpop.f32.mrf.mxu0
    %172 = vdwg.mxu0
    %v177 = vunpack.c.l.b16 %v108
    %v178 = vunpack.c.l.b16 %v109
    %v179 = vunpack.c.l.b16 %v110
    %v180 = vunpack.c.l.b16 %v111
    %v181 = vpack.c.b16 %v178, %v177
    %v182 = vpack.c.b16 %v180, %v179
    %185 = vmatprep.subr.bf16.mxu0 0
    %186 = vmatpush1.bf16.msra.mxu0 0
    %187 = vmatprep.subr.bf16.mxu0 0
    %188 = vmatpush1.bf16.msra.mxu0 0
    %189 = vmatprep.subr.bf16.mxu0 0
    %190 = vmatpush1.bf16.msra.mxu0 0
    %191 = vmatprep.subr.bf16.mxu0 0
    %192 = vmatpush1.bf16.msra.mxu0 0
    %193 = vmatprep.subr.bf16.mxu0 0
    %194 = vmatpush1.bf16.msra.mxu0 0
    %195 = vmatprep.subr.bf16.mxu0 0
    %196 = vmatpush1.bf16.msra.mxu0 0
    %197 = vmatprep.subr.bf16.mxu0 0
    %198 = vmatpush1.bf16.msra.mxu0 %v182
    %199 = vmatprep.subr.bf16.mxu0 0
    %200 = vmatpush1.bf16.msra.mxu0 %v181
    %201 = vmatprep.subr.bf16.mxu0 0
    %202 = vmatpush2.bf16.msra.mxu0 0
    %203 = vmatprep.subr.bf16.mxu0 0
    %204 = vmatpush2.bf16.msra.mxu0 0
    %205 = vmatprep.subr.bf16.mxu0 0
    %206 = vmatpush2.bf16.msra.mxu0 0
    %207 = vmatprep.subr.bf16.mxu0 0
    %208 = vmatpush2.bf16.msra.mxu0 0
    %209 = vmatprep.subr.bf16.mxu0 0
    %210 = vmatpush2.bf16.msra.mxu0 0
    %211 = vmatprep.subr.bf16.mxu0 0
    %212 = vmatpush2.bf16.msra.mxu0 0
    %213 = vmatprep.subr.bf16.mxu0 0
    %214 = vmatpush2.bf16.msra.mxu0 0
    %215 = vmatprep.subr.bf16.mxu0 0
    %216 = vmatpush2.bf16.msra.mxu0 0
    %217 = vmatprep.mubr.bf16.mxu0 0
    %218 = vmatmul.mubr.bf16.gmra.mxu0 %v130
    %v219 = vpop.f32.mrf.mxu0
    %v220 = vadd.f32 0.0, %v219
    %v221 = vpop.f32.mrf.mxu0
    %v222 = vpop.f32.mrf.mxu0
    %v223 = vadd.f32 0.0, %v222
    %v224 = vpop.f32.mrf.mxu0
    %225 = vdwg.mxu0
    %v230 = vunpack.c.l.b16 %v112
    %v231 = vunpack.c.l.b16 %v113
    %v232 = vunpack.c.l.b16 %v114
    %v233 = vunpack.c.l.b16 %v115
    %v234 = vpack.c.b16 %v231, %v230
    %v235 = vpack.c.b16 %v233, %v232
    %238 = vmatprep.subr.bf16.mxu0 0
    %239 = vmatpush1.bf16.msra.mxu0 0
    %240 = vmatprep.subr.bf16.mxu0 0
    %241 = vmatpush1.bf16.msra.mxu0 0
    %242 = vmatprep.subr.bf16.mxu0 0
    %243 = vmatpush1.bf16.msra.mxu0 0
    %244 = vmatprep.subr.bf16.mxu0 0
    %245 = vmatpush1.bf16.msra.mxu0 0
    %246 = vmatprep.subr.bf16.mxu0 0
    %247 = vmatpush1.bf16.msra.mxu0 0
    %248 = vmatprep.subr.bf16.mxu0 0
    %249 = vmatpush1.bf16.msra.mxu0 0
    %250 = vmatprep.subr.bf16.mxu0 0
    %251 = vmatpush1.bf16.msra.mxu0 %v235
    %252 = vmatprep.subr.bf16.mxu0 0
    %253 = vmatpush1.bf16.msra.mxu0 %v234
    %254 = vmatprep.subr.bf16.mxu0 0
    %255 = vmatpush2.bf16.msra.mxu0 0
    %256 = vmatprep.subr.bf16.mxu0 0
    %257 = vmatpush2.bf16.msra.mxu0 0
    %258 = vmatprep.subr.bf16.mxu0 0
    %259 = vmatpush2.bf16.msra.mxu0 0
    %260 = vmatprep.subr.bf16.mxu0 0
    %261 = vmatpush2.bf16.msra.mxu0 0
    %262 = vmatprep.subr.bf16.mxu0 0
    %263 = vmatpush2.bf16.msra.mxu0 0
    %264 = vmatprep.subr.bf16.mxu0 0
    %265 = vmatpush2.bf16.msra.mxu0 0
    %266 = vmatprep.subr.bf16.mxu0 0
    %267 = vmatpush2.bf16.msra.mxu0 0
    %268 = vmatprep.subr.bf16.mxu0 0
    %269 = vmatpush2.bf16.msra.mxu0 0
    %270 = vmatprep.mubr.bf16.mxu0 0
    %271 = vmatmul.mubr.bf16.gmra.mxu0 %v130
    %v272 = vpop.f32.mrf.mxu0
    %v273 = vadd.f32 0.0, %v272
    %v274 = vpop.f32.mrf.mxu0
    %v275 = vpop.f32.mrf.mxu0
    %v276 = vadd.f32 0.0, %v275
    %v277 = vpop.f32.mrf.mxu0
    %278 = vdwg.mxu0
    %v279 = vpack.c.bf16 %v167, %v167
    %v280 = vpack.c.bf16 %v170, %v170
    %v281 = vpack.c.bf16 %v220, %v220
    %v282 = vpack.c.bf16 %v223, %v223
    %vm283 = vcmask 64512
    %v285 = vsel %vm283, %v279, 0
    %v288 = vsel %vm283, %v281, 0
    %290 = vmatprep.subr.bf16.mxu0 0
    %291 = vmatpush1.bf16.xpose.msra.mxu0 0
    %292 = vmatprep.subr.bf16.mxu0 0
    %293 = vmatpush1.bf16.xpose.msra.mxu0 0
    %294 = vmatprep.subr.bf16.mxu0 0
    %295 = vmatpush1.bf16.xpose.msra.mxu0 0
    %296 = vmatprep.subr.bf16.mxu0 0
    %297 = vmatpush1.bf16.xpose.msra.mxu0 0
    %298 = vmatprep.subr.bf16.mxu0 0
    %299 = vmatpush1.bf16.xpose.msra.mxu0 0
    %300 = vmatprep.subr.bf16.mxu0 0
    %301 = vmatpush1.bf16.xpose.msra.mxu0 0
    %302 = vmatprep.subr.bf16.mxu0 0
    %303 = vmatpush1.bf16.xpose.msra.mxu0 0
    %304 = vmatprep.subr.bf16.mxu0 0
    %305 = vmatpush1.bf16.xpose.msra.mxu0 %v288
    %306 = vmatprep.subr.bf16.mxu0 0
    %307 = vmatpush2.bf16.xpose.msra.mxu0 0
    %308 = vmatprep.subr.bf16.mxu0 0
    %309 = vmatpush2.bf16.xpose.msra.mxu0 0
    %310 = vmatprep.subr.bf16.mxu0 0
    %311 = vmatpush2.bf16.xpose.msra.mxu0 0
    %312 = vmatprep.subr.bf16.mxu0 0
    %313 = vmatpush2.bf16.xpose.msra.mxu0 0
    %314 = vmatprep.subr.bf16.mxu0 0
    %315 = vmatpush2.bf16.xpose.msra.mxu0 0
    %316 = vmatprep.subr.bf16.mxu0 0
    %317 = vmatpush2.bf16.xpose.msra.mxu0 0
    %318 = vmatprep.subr.bf16.mxu0 0
    %319 = vmatpush2.bf16.xpose.msra.mxu0 0
    %320 = vmatprep.subr.bf16.mxu0 0
    %321 = vmatpush2.bf16.xpose.msra.mxu0 0
    %322 = vmatprep.mubr.bf16.mxu0 0
    %323 = vmatmul.mubr.bf16.gmra.mxu0 %v285
    %v324 = vpop.f32.mrf.mxu0
    %v325 = vadd.f32 %v103, %v324
    %v326 = vpop.f32.mrf.mxu0
    %v327 = vpop.f32.mrf.mxu0
    %v328 = vpop.f32.mrf.mxu0
    %329 = vdwg.mxu0
    %v331 = vsel %vm283, %v280, 0
    %v334 = vsel %vm283, %v282, 0
    %336 = vmatprep.subr.bf16.mxu0 0
    %337 = vmatpush1.bf16.xpose.msra.mxu0 0
    %338 = vmatprep.subr.bf16.mxu0 0
    %339 = vmatpush1.bf16.xpose.msra.mxu0 0
    %340 = vmatprep.subr.bf16.mxu0 0
    %341 = vmatpush1.bf16.xpose.msra.mxu0 0
    %342 = vmatprep.subr.bf16.mxu0 0
    %343 = vmatpush1.bf16.xpose.msra.mxu0 0
    %344 = vmatprep.subr.bf16.mxu0 0
    %345 = vmatpush1.bf16.xpose.msra.mxu0 0
    %346 = vmatprep.subr.bf16.mxu0 0
    %347 = vmatpush1.bf16.xpose.msra.mxu0 0
    %348 = vmatprep.subr.bf16.mxu0 0
    %349 = vmatpush1.bf16.xpose.msra.mxu0 0
    %350 = vmatprep.subr.bf16.mxu0 0
    %351 = vmatpush1.bf16.xpose.msra.mxu0 %v334
    %352 = vmatprep.subr.bf16.mxu0 0
    %353 = vmatpush2.bf16.xpose.msra.mxu0 0
    %354 = vmatprep.subr.bf16.mxu0 0
    %355 = vmatpush2.bf16.xpose.msra.mxu0 0
    %356 = vmatprep.subr.bf16.mxu0 0
    %357 = vmatpush2.bf16.xpose.msra.mxu0 0
    %358 = vmatprep.subr.bf16.mxu0 0
    %359 = vmatpush2.bf16.xpose.msra.mxu0 0
    %360 = vmatprep.subr.bf16.mxu0 0
    %361 = vmatpush2.bf16.xpose.msra.mxu0 0
    %362 = vmatprep.subr.bf16.mxu0 0
    %363 = vmatpush2.bf16.xpose.msra.mxu0 0
    %364 = vmatprep.subr.bf16.mxu0 0
    %365 = vmatpush2.bf16.xpose.msra.mxu0 0
    %366 = vmatprep.subr.bf16.mxu0 0
    %367 = vmatpush2.bf16.xpose.msra.mxu0 0
    %368 = vmatprep.mubr.bf16.mxu0 0
    %369 = vmatmul.mubr.bf16.gmra.mxu0 %v331
    %v370 = vpop.f32.mrf.mxu0
    %v371 = vadd.f32 %v103, %v370
    %v372 = vpop.f32.mrf.mxu0
    %v373 = vpop.f32.mrf.mxu0
    %v374 = vpop.f32.mrf.mxu0
    %375 = vdwg.mxu0
    %v376 = vsel %vm283, %v325, -inf
    %377 = vmax.xlane.f32.xlu0 %v376
    %v378 = vpop.xlane.xlu0 %377
    %v379 = vsel %vm283, %v371, -inf
    %380 = vmax.xlane.f32.xlu0 %v379
    %v381 = vpop.xlane.xlu0 %380
    %v382 = vsub.f32 %v325, %v378
    %v383 = vsub.f32 %v371, %v381
    %v384 = vmul.f32 %v382, 1.442695
    %v385 = vpow.pop %v384
    %v386 = vmul.f32 %v383, 1.442695
    %v387 = vpow.pop %v386
    %v388 = vsel %vm283, %v385, 0.0
    %389 = vadd.xlane.f32.xlu0 %v388
    %v390 = vpop.xlane.xlu0 %389
    %v391 = vsel %vm283, %v387, 0.0
    %392 = vadd.xlane.f32.xlu0 %v391
    %v393 = vpop.xlane.xlu0 %392
    %v394 = vrcp.pop %v390
    %v395 = vrcp.pop %v393
    %v396 = vmul.f32 %v385, %v394
    %v397 = vmul.f32 %v387, %v395
    %v398 = vpack.c.bf16 %v396, %v396
    %v399 = vpack.c.bf16 %v397, %v397
    %v400 = vpack.c.bf16 %v273, %v273
    %v401 = vpack.c.bf16 %v276, %v276
    %v403 = vsel %vm283, %v398, 0
    %vm405 = vcmask 1043456
    %v407 = vsel %vm405, %v400, 0
    %409 = vmatprep.subr.bf16.mxu0 0
    %410 = vmatpush1.bf16.msra.mxu0 0
    %411 = vmatprep.subr.bf16.mxu0 0
    %412 = vmatpush1.bf16.msra.mxu0 0
    %413 = vmatprep.subr.bf16.mxu0 0
    %414 = vmatpush1.bf16.msra.mxu0 0
    %415 = vmatprep.subr.bf16.mxu0 0
    %416 = vmatpush1.bf16.msra.mxu0 0
    %417 = vmatprep.subr.bf16.mxu0 0
    %418 = vmatpush1.bf16.msra.mxu0 0
    %419 = vmatprep.subr.bf16.mxu0 0
    %420 = vmatpush1.bf16.msra.mxu0 0
    %421 = vmatprep.subr.bf16.mxu0 0
    %422 = vmatpush1.bf16.msra.mxu0 0
    %423 = vmatprep.subr.bf16.mxu0 0
    %424 = vmatpush1.bf16.msra.mxu0 %v407
    %425 = vmatprep.subr.bf16.mxu0 0
    %426 = vmatpush2.bf16.msra.mxu0 0
    %427 = vmatprep.subr.bf16.mxu0 0
    %428 = vmatpush2.bf16.msra.mxu0 0
    %429 = vmatprep.subr.bf16.mxu0 0
    %430 = vmatpush2.bf16.msra.mxu0 0
    %431 = vmatprep.subr.bf16.mxu0 0
    %432 = vmatpush2.bf16.msra.mxu0 0
    %433 = vmatprep.subr.bf16.mxu0 0
    %434 = vmatpush2.bf16.msra.mxu0 0
    %435 = vmatprep.subr.bf16.mxu0 0
    %436 = vmatpush2.bf16.msra.mxu0 0
    %437 = vmatprep.subr.bf16.mxu0 0
    %438 = vmatpush2.bf16.msra.mxu0 0
    %439 = vmatprep.subr.bf16.mxu0 0
    %440 = vmatpush2.bf16.msra.mxu0 0
    %441 = vmatprep.mubr.bf16.mxu0 0
    %442 = vmatmul.mubr.bf16.gmra.mxu0 %v403
    %v443 = vpop.f32.mrf.mxu0
    %v444 = vadd.f32 0.0, %v443
    %v445 = vpop.f32.mrf.mxu0
    %v446 = vpop.f32.mrf.mxu0
    %v447 = vpop.f32.mrf.mxu0
    %448 = vdwg.mxu0
    %v450 = vsel %vm283, %v399, 0
    %v453 = vsel %vm405, %v401, 0
    %455 = vmatprep.subr.bf16.mxu0 0
    %456 = vmatpush1.bf16.msra.mxu0 0
    %457 = vmatprep.subr.bf16.mxu0 0
    %458 = vmatpush1.bf16.msra.mxu0 0
    %459 = vmatprep.subr.bf16.mxu0 0
    %460 = vmatpush1.bf16.msra.mxu0 0
    %461 = vmatprep.subr.bf16.mxu0 0
    %462 = vmatpush1.bf16.msra.mxu0 0
    %463 = vmatprep.subr.bf16.mxu0 0
    %464 = vmatpush1.bf16.msra.mxu0 0
    %465 = vmatprep.subr.bf16.mxu0 0
    %466 = vmatpush1.bf16.msra.mxu0 0
    %467 = vmatprep.subr.bf16.mxu0 0
    %468 = vmatpush1.bf16.msra.mxu0 0
    %469 = vmatprep.subr.bf16.mxu0 0
    %470 = vmatpush1.bf16.msra.mxu0 %v453
    %471 = vmatprep.subr.bf16.mxu0 0
    %472 = vmatpush2.bf16.msra.mxu0 0
    %473 = vmatprep.subr.bf16.mxu0 0
    %474 = vmatpush2.bf16.msra.mxu0 0
    %475 = vmatprep.subr.bf16.mxu0 0
    %476 = vmatpush2.bf16.msra.mxu0 0
    %477 = vmatprep.subr.bf16.mxu0 0
    %478 = vmatpush2.bf16.msra.mxu0 0
    %479 = vmatprep.subr.bf16.mxu0 0
    %480 = vmatpush2.bf16.msra.mxu0 0
    %481 = vmatprep.subr.bf16.mxu0 0
    %482 = vmatpush2.bf16.msra.mxu0 0
    %483 = vmatprep.subr.bf16.mxu0 0
    %484 = vmatpush2.bf16.msra.mxu0 0
    %485 = vmatprep.subr.bf16.mxu0 0
    %486 = vmatpush2.bf16.msra.mxu0 0
    %487 = vmatprep.mubr.bf16.mxu0 0
    %488 = vmatmul.mubr.bf16.gmra.mxu0 %v450
    %v489 = vpop.f32.mrf.mxu0
    %v490 = vadd.f32 0.0, %v489
    %v491 = vpop.f32.mrf.mxu0
    %v492 = vpop.f32.mrf.mxu0
    %v493 = vpop.f32.mrf.mxu0
    %494 = vdwg.mxu0
    %v495 = vpack.c.bf16 %v490, %v444
    %s496 = scalar_lea.vmem %s3, 16
    %v497 = vld [vmem:[%s496] sm:$0xf]
    %v498 = vld [vmem:[%s496 + $0x4] sm:$0xf]
    %v499 = vld [vmem:[%s496 + $0x8] sm:$0xf]
    %v500 = vld [vmem:[%s496 + $0xc] sm:$0xf]
    %s501 = scalar_lea.vmem %s4, 16
    %v502 = vld [vmem:[%s501] sm:$0xf]
    %v503 = vld [vmem:[%s501 + $0x4] sm:$0xf]
    %v504 = vld [vmem:[%s501 + $0x8] sm:$0xf]
    %v505 = vld [vmem:[%s501 + $0xc] sm:$0xf]
    %s506 = scalar_lea.vmem %s5, 16
    %v507 = vld [vmem:[%s506] sm:$0xf]
    %v508 = vld [vmem:[%s506 + $0x4] sm:$0xf]
    %v509 = vld [vmem:[%s506 + $0x8] sm:$0xf]
    %v510 = vld [vmem:[%s506 + $0xc] sm:$0xf]
    %s511 = scalar_lea.vmem %s6, 4
    %v512 = vld [vmem:[%s511] sm:$0xf]
    %v517 = vunpack.c.l.b16 %v497
    %v518 = vunpack.c.l.b16 %v498
    %v519 = vunpack.c.l.b16 %v499
    %v520 = vunpack.c.l.b16 %v500
    %v521 = vpack.c.b16 %v518, %v517
    %v522 = vpack.c.b16 %v520, %v519
    %525 = vmatprep.subr.bf16.mxu0 0
    %526 = vmatpush1.bf16.msra.mxu0 0
    %527 = vmatprep.subr.bf16.mxu0 0
    %528 = vmatpush1.bf16.msra.mxu0 0
    %529 = vmatprep.subr.bf16.mxu0 0
    %530 = vmatpush1.bf16.msra.mxu0 0
    %531 = vmatprep.subr.bf16.mxu0 0
    %532 = vmatpush1.bf16.msra.mxu0 0
    %533 = vmatprep.subr.bf16.mxu0 0
    %534 = vmatpush1.bf16.msra.mxu0 0
    %535 = vmatprep.subr.bf16.mxu0 0
    %536 = vmatpush1.bf16.msra.mxu0 0
    %537 = vmatprep.subr.bf16.mxu0 0
    %538 = vmatpush1.bf16.msra.mxu0 %v522
    %539 = vmatprep.subr.bf16.mxu0 0
    %540 = vmatpush1.bf16.msra.mxu0 %v521
    %541 = vmatprep.subr.bf16.mxu0 0
    %542 = vmatpush2.bf16.msra.mxu0 0
    %543 = vmatprep.subr.bf16.mxu0 0
    %544 = vmatpush2.bf16.msra.mxu0 0
    %545 = vmatprep.subr.bf16.mxu0 0
    %546 = vmatpush2.bf16.msra.mxu0 0
    %547 = vmatprep.subr.bf16.mxu0 0
    %548 = vmatpush2.bf16.msra.mxu0 0
    %549 = vmatprep.subr.bf16.mxu0 0
    %550 = vmatpush2.bf16.msra.mxu0 0
    %551 = vmatprep.subr.bf16.mxu0 0
    %552 = vmatpush2.bf16.msra.mxu0 0
    %553 = vmatprep.subr.bf16.mxu0 0
    %554 = vmatpush2.bf16.msra.mxu0 0
    %555 = vmatprep.subr.bf16.mxu0 0
    %556 = vmatpush2.bf16.msra.mxu0 0
    %557 = vmatprep.mubr.bf16.mxu0 0
    %558 = vmatmul.mubr.bf16.gmra.mxu0 %v130
    %v559 = vpop.f32.mrf.mxu0
    %v560 = vadd.f32 0.0, %v559
    %v561 = vpop.f32.mrf.mxu0
    %v562 = vpop.f32.mrf.mxu0
    %v563 = vadd.f32 0.0, %v562
    %v564 = vpop.f32.mrf.mxu0
    %565 = vdwg.mxu0
    %v570 = vunpack.c.l.b16 %v502
    %v571 = vunpack.c.l.b16 %v503
    %v572 = vunpack.c.l.b16 %v504
    %v573 = vunpack.c.l.b16 %v505
    %v574 = vpack.c.b16 %v571, %v570
    %v575 = vpack.c.b16 %v573, %v572
    %578 = vmatprep.subr.bf16.mxu0 0
    %579 = vmatpush1.bf16.msra.mxu0 0
    %580 = vmatprep.subr.bf16.mxu0 0
    %581 = vmatpush1.bf16.msra.mxu0 0
    %582 = vmatprep.subr.bf16.mxu0 0
    %583 = vmatpush1.bf16.msra.mxu0 0
    %584 = vmatprep.subr.bf16.mxu0 0
    %585 = vmatpush1.bf16.msra.mxu0 0
    %586 = vmatprep.subr.bf16.mxu0 0
    %587 = vmatpush1.bf16.msra.mxu0 0
    %588 = vmatprep.subr.bf16.mxu0 0
    %589 = vmatpush1.bf16.msra.mxu0 0
    %590 = vmatprep.subr.bf16.mxu0 0
    %591 = vmatpush1.bf16.msra.mxu0 %v575
    %592 = vmatprep.subr.bf16.mxu0 0
    %593 = vmatpush1.bf16.msra.mxu0 %v574
    %594 = vmatprep.subr.bf16.mxu0 0
    %595 = vmatpush2.bf16.msra.mxu0 0
    %596 = vmatprep.subr.bf16.mxu0 0
    %597 = vmatpush2.bf16.msra.mxu0 0
    %598 = vmatprep.subr.bf16.mxu0 0
    %599 = vmatpush2.bf16.msra.mxu0 0
    %600 = vmatprep.subr.bf16.mxu0 0
    %601 = vmatpush2.bf16.msra.mxu0 0
    %602 = vmatprep.subr.bf16.mxu0 0
    %603 = vmatpush2.bf16.msra.mxu0 0
    %604 = vmatprep.subr.bf16.mxu0 0
    %605 = vmatpush2.bf16.msra.mxu0 0
    %606 = vmatprep.subr.bf16.mxu0 0
    %607 = vmatpush2.bf16.msra.mxu0 0
    %608 = vmatprep.subr.bf16.mxu0 0
    %609 = vmatpush2.bf16.msra.mxu0 0
    %610 = vmatprep.mubr.bf16.mxu0 0
    %611 = vmatmul.mubr.bf16.gmra.mxu0 %v130
    %v612 = vpop.f32.mrf.mxu0
    %v613 = vadd.f32 0.0, %v612
    %v614 = vpop.f32.mrf.mxu0
    %v615 = vpop.f32.mrf.mxu0
    %v616 = vadd.f32 0.0, %v615
    %v617 = vpop.f32.mrf.mxu0
    %618 = vdwg.mxu0
    %v623 = vunpack.c.l.b16 %v507
    %v624 = vunpack.c.l.b16 %v508
    %v625 = vunpack.c.l.b16 %v509
    %v626 = vunpack.c.l.b16 %v510
    %v627 = vpack.c.b16 %v624, %v623
    %v628 = vpack.c.b16 %v626, %v625
    %631 = vmatprep.subr.bf16.mxu0 0
    %632 = vmatpush1.bf16.msra.mxu0 0
    %633 = vmatprep.subr.bf16.mxu0 0
    %634 = vmatpush1.bf16.msra.mxu0 0
    %635 = vmatprep.subr.bf16.mxu0 0
    %636 = vmatpush1.bf16.msra.mxu0 0
    %637 = vmatprep.subr.bf16.mxu0 0
    %638 = vmatpush1.bf16.msra.mxu0 0
    %639 = vmatprep.subr.bf16.mxu0 0
    %640 = vmatpush1.bf16.msra.mxu0 0
    %641 = vmatprep.subr.bf16.mxu0 0
    %642 = vmatpush1.bf16.msra.mxu0 0
    %643 = vmatprep.subr.bf16.mxu0 0
    %644 = vmatpush1.bf16.msra.mxu0 %v628
    %645 = vmatprep.subr.bf16.mxu0 0
    %646 = vmatpush1.bf16.msra.mxu0 %v627
    %647 = vmatprep.subr.bf16.mxu0 0
    %648 = vmatpush2.bf16.msra.mxu0 0
    %649 = vmatprep.subr.bf16.mxu0 0
    %650 = vmatpush2.bf16.msra.mxu0 0
    %651 = vmatprep.subr.bf16.mxu0 0
    %652 = vmatpush2.bf16.msra.mxu0 0
    %653 = vmatprep.subr.bf16.mxu0 0
    %654 = vmatpush2.bf16.msra.mxu0 0
    %655 = vmatprep.subr.bf16.mxu0 0
    %656 = vmatpush2.bf16.msra.mxu0 0
    %657 = vmatprep.subr.bf16.mxu0 0
    %658 = vmatpush2.bf16.msra.mxu0 0
    %659 = vmatprep.subr.bf16.mxu0 0
    %660 = vmatpush2.bf16.msra.mxu0 0
    %661 = vmatprep.subr.bf16.mxu0 0
    %662 = vmatpush2.bf16.msra.mxu0 0
    %663 = vmatprep.mubr.bf16.mxu0 0
    %664 = vmatmul.mubr.bf16.gmra.mxu0 %v130
    %v665 = vpop.f32.mrf.mxu0
    %v666 = vadd.f32 0.0, %v665
    %v667 = vpop.f32.mrf.mxu0
    %v668 = vpop.f32.mrf.mxu0
    %v669 = vadd.f32 0.0, %v668
    %v670 = vpop.f32.mrf.mxu0
    %671 = vdwg.mxu0
    %v672 = vpack.c.bf16 %v560, %v560
    %v673 = vpack.c.bf16 %v563, %v563
    %v674 = vpack.c.bf16 %v613, %v613
    %v675 = vpack.c.bf16 %v616, %v616
    %v677 = vsel %vm283, %v672, 0
    %v680 = vsel %vm283, %v674, 0
    %682 = vmatprep.subr.bf16.mxu0 0
    %683 = vmatpush1.bf16.xpose.msra.mxu0 0
    %684 = vmatprep.subr.bf16.mxu0 0
    %685 = vmatpush1.bf16.xpose.msra.mxu0 0
    %686 = vmatprep.subr.bf16.mxu0 0
    %687 = vmatpush1.bf16.xpose.msra.mxu0 0
    %688 = vmatprep.subr.bf16.mxu0 0
    %689 = vmatpush1.bf16.xpose.msra.mxu0 0
    %690 = vmatprep.subr.bf16.mxu0 0
    %691 = vmatpush1.bf16.xpose.msra.mxu0 0
    %692 = vmatprep.subr.bf16.mxu0 0
    %693 = vmatpush1.bf16.xpose.msra.mxu0 0
    %694 = vmatprep.subr.bf16.mxu0 0
    %695 = vmatpush1.bf16.xpose.msra.mxu0 0
    %696 = vmatprep.subr.bf16.mxu0 0
    %697 = vmatpush1.bf16.xpose.msra.mxu0 %v680
    %698 = vmatprep.subr.bf16.mxu0 0
    %699 = vmatpush2.bf16.xpose.msra.mxu0 0
    %700 = vmatprep.subr.bf16.mxu0 0
    %701 = vmatpush2.bf16.xpose.msra.mxu0 0
    %702 = vmatprep.subr.bf16.mxu0 0
    %703 = vmatpush2.bf16.xpose.msra.mxu0 0
    %704 = vmatprep.subr.bf16.mxu0 0
    %705 = vmatpush2.bf16.xpose.msra.mxu0 0
    %706 = vmatprep.subr.bf16.mxu0 0
    %707 = vmatpush2.bf16.xpose.msra.mxu0 0
    %708 = vmatprep.subr.bf16.mxu0 0
    %709 = vmatpush2.bf16.xpose.msra.mxu0 0
    %710 = vmatprep.subr.bf16.mxu0 0
    %711 = vmatpush2.bf16.xpose.msra.mxu0 0
    %712 = vmatprep.subr.bf16.mxu0 0
    %713 = vmatpush2.bf16.xpose.msra.mxu0 0
    %714 = vmatprep.mubr.bf16.mxu0 0
    %715 = vmatmul.mubr.bf16.gmra.mxu0 %v677
    %v716 = vpop.f32.mrf.mxu0
    %v717 = vadd.f32 %v103, %v716
    %v718 = vpop.f32.mrf.mxu0
    %v719 = vpop.f32.mrf.mxu0
    %v720 = vpop.f32.mrf.mxu0
    %721 = vdwg.mxu0
    %v723 = vsel %vm283, %v673, 0
    %v726 = vsel %vm283, %v675, 0
    %728 = vmatprep.subr.bf16.mxu0 0
    %729 = vmatpush1.bf16.xpose.msra.mxu0 0
    %730 = vmatprep.subr.bf16.mxu0 0
    %731 = vmatpush1.bf16.xpose.msra.mxu0 0
    %732 = vmatprep.subr.bf16.mxu0 0
    %733 = vmatpush1.bf16.xpose.msra.mxu0 0
    %734 = vmatprep.subr.bf16.mxu0 0
    %735 = vmatpush1.bf16.xpose.msra.mxu0 0
    %736 = vmatprep.subr.bf16.mxu0 0
    %737 = vmatpush1.bf16.xpose.msra.mxu0 0
    %738 = vmatprep.subr.bf16.mxu0 0
    %739 = vmatpush1.bf16.xpose.msra.mxu0 0
    %740 = vmatprep.subr.bf16.mxu0 0
    %741 = vmatpush1.bf16.xpose.msra.mxu0 0
    %742 = vmatprep.subr.bf16.mxu0 0
    %743 = vmatpush1.bf16.xpose.msra.mxu0 %v726
    %744 = vmatprep.subr.bf16.mxu0 0
    %745 = vmatpush2.bf16.xpose.msra.mxu0 0
    %746 = vmatprep.subr.bf16.mxu0 0
    %747 = vmatpush2.bf16.xpose.msra.mxu0 0
    %748 = vmatprep.subr.bf16.mxu0 0
    %749 = vmatpush2.bf16.xpose.msra.mxu0 0
    %750 = vmatprep.subr.bf16.mxu0 0
    %751 = vmatpush2.bf16.xpose.msra.mxu0 0
    %752 = vmatprep.subr.bf16.mxu0 0
    %753 = vmatpush2.bf16.xpose.msra.mxu0 0
    %754 = vmatprep.subr.bf16.mxu0 0
    %755 = vmatpush2.bf16.xpose.msra.mxu0 0
    %756 = vmatprep.subr.bf16.mxu0 0
    %757 = vmatpush2.bf16.xpose.msra.mxu0 0
    %758 = vmatprep.subr.bf16.mxu0 0
    %759 = vmatpush2.bf16.xpose.msra.mxu0 0
    %760 = vmatprep.mubr.bf16.mxu0 0
    %761 = vmatmul.mubr.bf16.gmra.mxu0 %v723
    %v762 = vpop.f32.mrf.mxu0
    %v763 = vadd.f32 %v103, %v762
    %v764 = vpop.f32.mrf.mxu0
    %v765 = vpop.f32.mrf.mxu0
    %v766 = vpop.f32.mrf.mxu0
    %767 = vdwg.mxu0
    %v768 = vsel %vm283, %v717, -inf
    %769 = vmax.xlane.f32.xlu0 %v768
    %v770 = vpop.xlane.xlu0 %769
    %v771 = vsel %vm283, %v763, -inf
    %772 = vmax.xlane.f32.xlu0 %v771
    %v773 = vpop.xlane.xlu0 %772
    %v774 = vsub.f32 %v717, %v770
    %v775 = vsub.f32 %v763, %v773
    %v776 = vmul.f32 %v774, 1.442695
    %v777 = vpow.pop %v776
    %v778 = vmul.f32 %v775, 1.442695
    %v779 = vpow.pop %v778
    %v780 = vsel %vm283, %v777, 0.0
    %781 = vadd.xlane.f32.xlu0 %v780
    %v782 = vpop.xlane.xlu0 %781
    %v783 = vsel %vm283, %v779, 0.0
    %784 = vadd.xlane.f32.xlu0 %v783
    %v785 = vpop.xlane.xlu0 %784
    %v786 = vrcp.pop %v782
    %v787 = vrcp.pop %v785
    %v788 = vmul.f32 %v777, %v786
    %v789 = vmul.f32 %v779, %v787
    %v790 = vpack.c.bf16 %v788, %v788
    %v791 = vpack.c.bf16 %v789, %v789
    %v792 = vpack.c.bf16 %v666, %v666
    %v793 = vpack.c.bf16 %v669, %v669
    %v795 = vsel %vm283, %v790, 0
    %v798 = vsel %vm405, %v792, 0
    %800 = vmatprep.subr.bf16.mxu0 0
    %801 = vmatpush1.bf16.msra.mxu0 0
    %802 = vmatprep.subr.bf16.mxu0 0
    %803 = vmatpush1.bf16.msra.mxu0 0
    %804 = vmatprep.subr.bf16.mxu0 0
    %805 = vmatpush1.bf16.msra.mxu0 0
    %806 = vmatprep.subr.bf16.mxu0 0
    %807 = vmatpush1.bf16.msra.mxu0 0
    %808 = vmatprep.subr.bf16.mxu0 0
    %809 = vmatpush1.bf16.msra.mxu0 0
    %810 = vmatprep.subr.bf16.mxu0 0
    %811 = vmatpush1.bf16.msra.mxu0 0
    %812 = vmatprep.subr.bf16.mxu0 0
    %813 = vmatpush1.bf16.msra.mxu0 0
    %814 = vmatprep.subr.bf16.mxu0 0
    %815 = vmatpush1.bf16.msra.mxu0 %v798
    %816 = vmatprep.subr.bf16.mxu0 0
    %817 = vmatpush2.bf16.msra.mxu0 0
    %818 = vmatprep.subr.bf16.mxu0 0
    %819 = vmatpush2.bf16.msra.mxu0 0
    %820 = vmatprep.subr.bf16.mxu0 0
    %821 = vmatpush2.bf16.msra.mxu0 0
    %822 = vmatprep.subr.bf16.mxu0 0
    %823 = vmatpush2.bf16.msra.mxu0 0
    %824 = vmatprep.subr.bf16.mxu0 0
    %825 = vmatpush2.bf16.msra.mxu0 0
    %826 = vmatprep.subr.bf16.mxu0 0
    %827 = vmatpush2.bf16.msra.mxu0 0
    %828 = vmatprep.subr.bf16.mxu0 0
    %829 = vmatpush2.bf16.msra.mxu0 0
    %830 = vmatprep.subr.bf16.mxu0 0
    %831 = vmatpush2.bf16.msra.mxu0 0
    %832 = vmatprep.mubr.bf16.mxu0 0
    %833 = vmatmul.mubr.bf16.gmra.mxu0 %v795
    %v834 = vpop.f32.mrf.mxu0
    %v835 = vadd.f32 0.0, %v834
    %v836 = vpop.f32.mrf.mxu0
    %v837 = vpop.f32.mrf.mxu0
    %v838 = vpop.f32.mrf.mxu0
    %839 = vdwg.mxu0
    %v841 = vsel %vm283, %v791, 0
    %v844 = vsel %vm405, %v793, 0
    %846 = vmatprep.subr.bf16.mxu0 0
    %847 = vmatpush1.bf16.msra.mxu0 0
    %848 = vmatprep.subr.bf16.mxu0 0
    %849 = vmatpush1.bf16.msra.mxu0 0
    %850 = vmatprep.subr.bf16.mxu0 0
    %851 = vmatpush1.bf16.msra.mxu0 0
    %852 = vmatprep.subr.bf16.mxu0 0
    %853 = vmatpush1.bf16.msra.mxu0 0
    %854 = vmatprep.subr.bf16.mxu0 0
    %855 = vmatpush1.bf16.msra.mxu0 0
    %856 = vmatprep.subr.bf16.mxu0 0
    %857 = vmatpush1.bf16.msra.mxu0 0
    %858 = vmatprep.subr.bf16.mxu0 0
    %859 = vmatpush1.bf16.msra.mxu0 0
    %860 = vmatprep.subr.bf16.mxu0 0
    %861 = vmatpush1.bf16.msra.mxu0 %v844
    %862 = vmatprep.subr.bf16.mxu0 0
    %863 = vmatpush2.bf16.msra.mxu0 0
    %864 = vmatprep.subr.bf16.mxu0 0
    %865 = vmatpush2.bf16.msra.mxu0 0
    %866 = vmatprep.subr.bf16.mxu0 0
    %867 = vmatpush2.bf16.msra.mxu0 0
    %868 = vmatprep.subr.bf16.mxu0 0
    %869 = vmatpush2.bf16.msra.mxu0 0
    %870 = vmatprep.subr.bf16.mxu0 0
    %871 = vmatpush2.bf16.msra.mxu0 0
    %872 = vmatprep.subr.bf16.mxu0 0
    %873 = vmatpush2.bf16.msra.mxu0 0
    %874 = vmatprep.subr.bf16.mxu0 0
    %875 = vmatpush2.bf16.msra.mxu0 0
    %876 = vmatprep.subr.bf16.mxu0 0
    %877 = vmatpush2.bf16.msra.mxu0 0
    %878 = vmatprep.mubr.bf16.mxu0 0
    %879 = vmatmul.mubr.bf16.gmra.mxu0 %v841
    %v880 = vpop.f32.mrf.mxu0
    %v881 = vadd.f32 0.0, %v880
    %v882 = vpop.f32.mrf.mxu0
    %v883 = vpop.f32.mrf.mxu0
    %v884 = vpop.f32.mrf.mxu0
    %885 = vdwg.mxu0
    %v886 = vpack.c.bf16 %v881, %v835
    %v888 = vsel %vm283, %v886, 0
    %v891 = vsel %vm405, %v512, 0
    %893 = vmatprep.subr.bf16.mxu0 0
    %894 = vmatpush1.bf16.msra.mxu0 0
    %895 = vmatprep.subr.bf16.mxu0 0
    %896 = vmatpush1.bf16.msra.mxu0 0
    %897 = vmatprep.subr.bf16.mxu0 0
    %898 = vmatpush1.bf16.msra.mxu0 0
    %899 = vmatprep.subr.bf16.mxu0 0
    %900 = vmatpush1.bf16.msra.mxu0 0
    %901 = vmatprep.subr.bf16.mxu0 0
    %902 = vmatpush1.bf16.msra.mxu0 0
    %903 = vmatprep.subr.bf16.mxu0 0
    %904 = vmatpush1.bf16.msra.mxu0 0
    %905 = vmatprep.subr.bf16.mxu0 0
    %906 = vmatpush1.bf16.msra.mxu0 0
    %907 = vmatprep.subr.bf16.mxu0 0
    %908 = vmatpush1.bf16.msra.mxu0 %v891
    %909 = vmatprep.subr.bf16.mxu0 0
    %910 = vmatpush2.bf16.msra.mxu0 0
    %911 = vmatprep.subr.bf16.mxu0 0
    %912 = vmatpush2.bf16.msra.mxu0 0
    %913 = vmatprep.subr.bf16.mxu0 0
    %914 = vmatpush2.bf16.msra.mxu0 0
    %915 = vmatprep.subr.bf16.mxu0 0
    %916 = vmatpush2.bf16.msra.mxu0 0
    %917 = vmatprep.subr.bf16.mxu0 0
    %918 = vmatpush2.bf16.msra.mxu0 0
    %919 = vmatprep.subr.bf16.mxu0 0
    %920 = vmatpush2.bf16.msra.mxu0 0
    %921 = vmatprep.subr.bf16.mxu0 0
    %922 = vmatpush2.bf16.msra.mxu0 0
    %923 = vmatprep.subr.bf16.mxu0 0
    %924 = vmatpush2.bf16.msra.mxu0 0
    %925 = vmatprep.mubr.bf16.mxu0 0
    %926 = vmatmul.mubr.bf16.gmra.mxu0 %v888
    %v927 = vpop.f32.mrf.mxu0
    %v928 = vadd.f32 0.0, %v927
    %v929 = vpop.f32.mrf.mxu0
    %v930 = vpop.f32.mrf.mxu0
    %v931 = vadd.f32 0.0, %v930
    %v932 = vpop.f32.mrf.mxu0
    %933 = vdwg.mxu0
    %v935 = vsel %vm283, %v495, 0
    %v938 = vsel %vm405, %v116, 0
    %940 = vmatprep.subr.bf16.mxu0 0
    %941 = vmatpush1.bf16.msra.mxu0 0
    %942 = vmatprep.subr.bf16.mxu0 0
    %943 = vmatpush1.bf16.msra.mxu0 0
    %944 = vmatprep.subr.bf16.mxu0 0
    %945 = vmatpush1.bf16.msra.mxu0 0
    %946 = vmatprep.subr.bf16.mxu0 0
    %947 = vmatpush1.bf16.msra.mxu0 0
    %948 = vmatprep.subr.bf16.mxu0 0
    %949 = vmatpush1.bf16.msra.mxu0 0
    %950 = vmatprep.subr.bf16.mxu0 0
    %951 = vmatpush1.bf16.msra.mxu0 0
    %952 = vmatprep.subr.bf16.mxu0 0
    %953 = vmatpush1.bf16.msra.mxu0 0
    %954 = vmatprep.subr.bf16.mxu0 0
    %955 = vmatpush1.bf16.msra.mxu0 %v938
    %956 = vmatprep.subr.bf16.mxu0 0
    %957 = vmatpush2.bf16.msra.mxu0 0
    %958 = vmatprep.subr.bf16.mxu0 0
    %959 = vmatpush2.bf16.msra.mxu0 0
    %960 = vmatprep.subr.bf16.mxu0 0
    %961 = vmatpush2.bf16.msra.mxu0 0
    %962 = vmatprep.subr.bf16.mxu0 0
    %963 = vmatpush2.bf16.msra.mxu0 0
    %964 = vmatprep.subr.bf16.mxu0 0
    %965 = vmatpush2.bf16.msra.mxu0 0
    %966 = vmatprep.subr.bf16.mxu0 0
    %967 = vmatpush2.bf16.msra.mxu0 0
    %968 = vmatprep.subr.bf16.mxu0 0
    %969 = vmatpush2.bf16.msra.mxu0 0
    %970 = vmatprep.subr.bf16.mxu0 0
    %971 = vmatpush2.bf16.msra.mxu0 0
    %972 = vmatprep.mubr.bf16.mxu0 0
    %973 = vmatmul.mubr.bf16.gmra.mxu0 %v935
    %v974 = vpop.f32.mrf.mxu0
    %v975 = vadd.f32 %v928, %v974
    %v976 = vpop.f32.mrf.mxu0
    %v977 = vpop.f32.mrf.mxu0
    %v978 = vadd.f32 %v931, %v977
    %v979 = vpop.f32.mrf.mxu0
    %980 = vdwg.mxu0
    %s981 = scalar_lea.vmem %s3, 32
    %v982 = vld [vmem:[%s981] sm:$0xf]
    %v983 = vld [vmem:[%s981 + $0x4] sm:$0xf]
    %v984 = vld [vmem:[%s981 + $0x8] sm:$0xf]
    %v985 = vld [vmem:[%s981 + $0xc] sm:$0xf]
    %s986 = scalar_lea.vmem %s4, 32
    %v987 = vld [vmem:[%s986] sm:$0xf]
    %v988 = vld [vmem:[%s986 + $0x4] sm:$0xf]
    %v989 = vld [vmem:[%s986 + $0x8] sm:$0xf]
    %v990 = vld [vmem:[%s986 + $0xc] sm:$0xf]
    %s991 = scalar_lea.vmem %s5, 32
    %v992 = vld [vmem:[%s991] sm:$0xf]
    %v993 = vld [vmem:[%s991 + $0x4] sm:$0xf]
    %v994 = vld [vmem:[%s991 + $0x8] sm:$0xf]
    %v995 = vld [vmem:[%s991 + $0xc] sm:$0xf]
    %s996 = scalar_lea.vmem %s6, 8
    %v997 = vld [vmem:[%s996] sm:$0xf]
    %v1002 = vunpack.c.l.b16 %v982
    %v1003 = vunpack.c.l.b16 %v983
    %v1004 = vunpack.c.l.b16 %v984
    %v1005 = vunpack.c.l.b16 %v985
    %v1006 = vpack.c.b16 %v1003, %v1002
    %v1007 = vpack.c.b16 %v1005, %v1004
    %1010 = vmatprep.subr.bf16.mxu0 0
    %1011 = vmatpush1.bf16.msra.mxu0 0
    %1012 = vmatprep.subr.bf16.mxu0 0
    %1013 = vmatpush1.bf16.msra.mxu0 0
    %1014 = vmatprep.subr.bf16.mxu0 0
    %1015 = vmatpush1.bf16.msra.mxu0 0
    %1016 = vmatprep.subr.bf16.mxu0 0
    %1017 = vmatpush1.bf16.msra.mxu0 0
    %1018 = vmatprep.subr.bf16.mxu0 0
    %1019 = vmatpush1.bf16.msra.mxu0 0
    %1020 = vmatprep.subr.bf16.mxu0 0
    %1021 = vmatpush1.bf16.msra.mxu0 0
    %1022 = vmatprep.subr.bf16.mxu0 0
    %1023 = vmatpush1.bf16.msra.mxu0 %v1007
    %1024 = vmatprep.subr.bf16.mxu0 0
    %1025 = vmatpush1.bf16.msra.mxu0 %v1006
    %1026 = vmatprep.subr.bf16.mxu0 0
    %1027 = vmatpush2.bf16.msra.mxu0 0
    %1028 = vmatprep.subr.bf16.mxu0 0
    %1029 = vmatpush2.bf16.msra.mxu0 0
    %1030 = vmatprep.subr.bf16.mxu0 0
    %1031 = vmatpush2.bf16.msra.mxu0 0
    %1032 = vmatprep.subr.bf16.mxu0 0
    %1033 = vmatpush2.bf16.msra.mxu0 0
    %1034 = vmatprep.subr.bf16.mxu0 0
    %1035 = vmatpush2.bf16.msra.mxu0 0
    %1036 = vmatprep.subr.bf16.mxu0 0
    %1037 = vmatpush2.bf16.msra.mxu0 0
    %1038 = vmatprep.subr.bf16.mxu0 0
    %1039 = vmatpush2.bf16.msra.mxu0 0
    %1040 = vmatprep.subr.bf16.mxu0 0
    %1041 = vmatpush2.bf16.msra.mxu0 0
    %1042 = vmatprep.mubr.bf16.mxu0 0
    %1043 = vmatmul.mubr.bf16.gmra.mxu0 %v130
    %v1044 = vpop.f32.mrf.mxu0
    %v1045 = vadd.f32 0.0, %v1044
    %v1046 = vpop.f32.mrf.mxu0
    %v1047 = vpop.f32.mrf.mxu0
    %v1048 = vadd.f32 0.0, %v1047
    %v1049 = vpop.f32.mrf.mxu0
    %1050 = vdwg.mxu0
    %v1055 = vunpack.c.l.b16 %v987
    %v1056 = vunpack.c.l.b16 %v988
    %v1057 = vunpack.c.l.b16 %v989
    %v1058 = vunpack.c.l.b16 %v990
    %v1059 = vpack.c.b16 %v1056, %v1055
    %v1060 = vpack.c.b16 %v1058, %v1057
    %1063 = vmatprep.subr.bf16.mxu0 0
    %1064 = vmatpush1.bf16.msra.mxu0 0
    %1065 = vmatprep.subr.bf16.mxu0 0
    %1066 = vmatpush1.bf16.msra.mxu0 0
    %1067 = vmatprep.subr.bf16.mxu0 0
    %1068 = vmatpush1.bf16.msra.mxu0 0
    %1069 = vmatprep.subr.bf16.mxu0 0
    %1070 = vmatpush1.bf16.msra.mxu0 0
    %1071 = vmatprep.subr.bf16.mxu0 0
    %1072 = vmatpush1.bf16.msra.mxu0 0
    %1073 = vmatprep.subr.bf16.mxu0 0
    %1074 = vmatpush1.bf16.msra.mxu0 0
    %1075 = vmatprep.subr.bf16.mxu0 0
    %1076 = vmatpush1.bf16.msra.mxu0 %v1060
    %1077 = vmatprep.subr.bf16.mxu0 0
    %1078 = vmatpush1.bf16.msra.mxu0 %v1059
    %1079 = vmatprep.subr.bf16.mxu0 0
    %1080 = vmatpush2.bf16.msra.mxu0 0
    %1081 = vmatprep.subr.bf16.mxu0 0
    %1082 = vmatpush2.bf16.msra.mxu0 0
    %1083 = vmatprep.subr.bf16.mxu0 0
    %1084 = vmatpush2.bf16.msra.mxu0 0
    %1085 = vmatprep.subr.bf16.mxu0 0
    %1086 = vmatpush2.bf16.msra.mxu0 0
    %1087 = vmatprep.subr.bf16.mxu0 0
    %1088 = vmatpush2.bf16.msra.mxu0 0
    %1089 = vmatprep.subr.bf16.mxu0 0
    %1090 = vmatpush2.bf16.msra.mxu0 0
    %1091 = vmatprep.subr.bf16.mxu0 0
    %1092 = vmatpush2.bf16.msra.mxu0 0
    %1093 = vmatprep.subr.bf16.mxu0 0
    %1094 = vmatpush2.bf16.msra.mxu0 0
    %1095 = vmatprep.mubr.bf16.mxu0 0
    %1096 = vmatmul.mubr.bf16.gmra.mxu0 %v130
    %v1097 = vpop.f32.mrf.mxu0
    %v1098 = vadd.f32 0.0, %v1097
    %v1099 = vpop.f32.mrf.mxu0
    %v1100 = vpop.f32.mrf.mxu0
    %v1101 = vadd.f32 0.0, %v1100
    %v1102 = vpop.f32.mrf.mxu0
    %1103 = vdwg.mxu0
    %v1108 = vunpack.c.l.b16 %v992
    %v1109 = vunpack.c.l.b16 %v993
    %v1110 = vunpack.c.l.b16 %v994
    %v1111 = vunpack.c.l.b16 %v995
    %v1112 = vpack.c.b16 %v1109, %v1108
    %v1113 = vpack.c.b16 %v1111, %v1110
    %1116 = vmatprep.subr.bf16.mxu0 0
    %1117 = vmatpush1.bf16.msra.mxu0 0
    %1118 = vmatprep.subr.bf16.mxu0 0
    %1119 = vmatpush1.bf16.msra.mxu0 0
    %1120 = vmatprep.subr.bf16.mxu0 0
    %1121 = vmatpush1.bf16.msra.mxu0 0
    %1122 = vmatprep.subr.bf16.mxu0 0
    %1123 = vmatpush1.bf16.msra.mxu0 0
    %1124 = vmatprep.subr.bf16.mxu0 0
    %1125 = vmatpush1.bf16.msra.mxu0 0
    %1126 = vmatprep.subr.bf16.mxu0 0
    %1127 = vmatpush1.bf16.msra.mxu0 0
    %1128 = vmatprep.subr.bf16.mxu0 0
    %1129 = vmatpush1.bf16.msra.mxu0 %v1113
    %1130 = vmatprep.subr.bf16.mxu0 0
    %1131 = vmatpush1.bf16.msra.mxu0 %v1112
    %1132 = vmatprep.subr.bf16.mxu0 0
    %1133 = vmatpush2.bf16.msra.mxu0 0
    %1134 = vmatprep.subr.bf16.mxu0 0
    %1135 = vmatpush2.bf16.msra.mxu0 0
    %1136 = vmatprep.subr.bf16.mxu0 0
    %1137 = vmatpush2.bf16.msra.mxu0 0
    %1138 = vmatprep.subr.bf16.mxu0 0
    %1139 = vmatpush2.bf16.msra.mxu0 0
    %1140 = vmatprep.subr.bf16.mxu0 0
    %1141 = vmatpush2.bf16.msra.mxu0 0
    %1142 = vmatprep.subr.bf16.mxu0 0
    %1143 = vmatpush2.bf16.msra.mxu0 0
    %1144 = vmatprep.subr.bf16.mxu0 0
    %1145 = vmatpush2.bf16.msra.mxu0 0
    %1146 = vmatprep.subr.bf16.mxu0 0
    %1147 = vmatpush2.bf16.msra.mxu0 0
    %1148 = vmatprep.mubr.bf16.mxu0 0
    %1149 = vmatmul.mubr.bf16.gmra.mxu0 %v130
    %v1150 = vpop.f32.mrf.mxu0
    %v1151 = vadd.f32 0.0, %v1150
    %v1152 = vpop.f32.mrf.mxu0
    %v1153 = vpop.f32.mrf.mxu0
    %v1154 = vadd.f32 0.0, %v1153
    %v1155 = vpop.f32.mrf.mxu0
    %1156 = vdwg.mxu0
    %v1157 = vpack.c.bf16 %v1045, %v1045
    %v1158 = vpack.c.bf16 %v1048, %v1048
    %v1159 = vpack.c.bf16 %v1098, %v1098
    %v1160 = vpack.c.bf16 %v1101, %v1101
    %v1162 = vsel %vm283, %v1157, 0
    %v1165 = vsel %vm283, %v1159, 0
    %1167 = vmatprep.subr.bf16.mxu0 0
    %1168 = vmatpush1.bf16.xpose.msra.mxu0 0
    %1169 = vmatprep.subr.bf16.mxu0 0
    %1170 = vmatpush1.bf16.xpose.msra.mxu0 0
    %1171 = vmatprep.subr.bf16.mxu0 0
    %1172 = vmatpush1.bf16.xpose.msra.mxu0 0
    %1173 = vmatprep.subr.bf16.mxu0 0
    %1174 = vmatpush1.bf16.xpose.msra.mxu0 0
    %1175 = vmatprep.subr.bf16.mxu0 0
    %1176 = vmatpush1.bf16.xpose.msra.mxu0 0
    %1177 = vmatprep.subr.bf16.mxu0 0
    %1178 = vmatpush1.bf16.xpose.msra.mxu0 0
    %1179 = vmatprep.subr.bf16.mxu0 0
    %1180 = vmatpush1.bf16.xpose.msra.mxu0 0
    %1181 = vmatprep.subr.bf16.mxu0 0
    %1182 = vmatpush1.bf16.xpose.msra.mxu0 %v1165
    %1183 = vmatprep.subr.bf16.mxu0 0
    %1184 = vmatpush2.bf16.xpose.msra.mxu0 0
    %1185 = vmatprep.subr.bf16.mxu0 0
    %1186 = vmatpush2.bf16.xpose.msra.mxu0 0
    %1187 = vmatprep.subr.bf16.mxu0 0
    %1188 = vmatpush2.bf16.xpose.msra.mxu0 0
    %1189 = vmatprep.subr.bf16.mxu0 0
    %1190 = vmatpush2.bf16.xpose.msra.mxu0 0
    %1191 = vmatprep.subr.bf16.mxu0 0
    %1192 = vmatpush2.bf16.xpose.msra.mxu0 0
    %1193 = vmatprep.subr.bf16.mxu0 0
    %1194 = vmatpush2.bf16.xpose.msra.mxu0 0
    %1195 = vmatprep.subr.bf16.mxu0 0
    %1196 = vmatpush2.bf16.xpose.msra.mxu0 0
    %1197 = vmatprep.subr.bf16.mxu0 0
    %1198 = vmatpush2.bf16.xpose.msra.mxu0 0
    %1199 = vmatprep.mubr.bf16.mxu0 0
    %1200 = vmatmul.mubr.bf16.gmra.mxu0 %v1162
    %v1201 = vpop.f32.mrf.mxu0
    %v1202 = vadd.f32 %v103, %v1201
    %v1203 = vpop.f32.mrf.mxu0
    %v1204 = vpop.f32.mrf.mxu0
    %v1205 = vpop.f32.mrf.mxu0
    %1206 = vdwg.mxu0
    %v1208 = vsel %vm283, %v1158, 0
    %v1211 = vsel %vm283, %v1160, 0
    %1213 = vmatprep.subr.bf16.mxu0 0
    %1214 = vmatpush1.bf16.xpose.msra.mxu0 0
    %1215 = vmatprep.subr.bf16.mxu0 0
    %1216 = vmatpush1.bf16.xpose.msra.mxu0 0
    %1217 = vmatprep.subr.bf16.mxu0 0
    %1218 = vmatpush1.bf16.xpose.msra.mxu0 0
    %1219 = vmatprep.subr.bf16.mxu0 0
    %1220 = vmatpush1.bf16.xpose.msra.mxu0 0
    %1221 = vmatprep.subr.bf16.mxu0 0
    %1222 = vmatpush1.bf16.xpose.msra.mxu0 0
    %1223 = vmatprep.subr.bf16.mxu0 0
    %1224 = vmatpush1.bf16.xpose.msra.mxu0 0
    %1225 = vmatprep.subr.bf16.mxu0 0
    %1226 = vmatpush1.bf16.xpose.msra.mxu0 0
    %1227 = vmatprep.subr.bf16.mxu0 0
    %1228 = vmatpush1.bf16.xpose.msra.mxu0 %v1211
    %1229 = vmatprep.subr.bf16.mxu0 0
    %1230 = vmatpush2.bf16.xpose.msra.mxu0 0
    %1231 = vmatprep.subr.bf16.mxu0 0
    %1232 = vmatpush2.bf16.xpose.msra.mxu0 0
    %1233 = vmatprep.subr.bf16.mxu0 0
    %1234 = vmatpush2.bf16.xpose.msra.mxu0 0
    %1235 = vmatprep.subr.bf16.mxu0 0
    %1236 = vmatpush2.bf16.xpose.msra.mxu0 0
    %1237 = vmatprep.subr.bf16.mxu0 0
    %1238 = vmatpush2.bf16.xpose.msra.mxu0 0
    %1239 = vmatprep.subr.bf16.mxu0 0
    %1240 = vmatpush2.bf16.xpose.msra.mxu0 0
    %1241 = vmatprep.subr.bf16.mxu0 0
    %1242 = vmatpush2.bf16.xpose.msra.mxu0 0
    %1243 = vmatprep.subr.bf16.mxu0 0
    %1244 = vmatpush2.bf16.xpose.msra.mxu0 0
    %1245 = vmatprep.mubr.bf16.mxu0 0
    %1246 = vmatmul.mubr.bf16.gmra.mxu0 %v1208
    %v1247 = vpop.f32.mrf.mxu0
    %v1248 = vadd.f32 %v103, %v1247
    %v1249 = vpop.f32.mrf.mxu0
    %v1250 = vpop.f32.mrf.mxu0
    %v1251 = vpop.f32.mrf.mxu0
    %1252 = vdwg.mxu0
    %v1253 = vsel %vm283, %v1202, -inf
    %1254 = vmax.xlane.f32.xlu0 %v1253
    %v1255 = vpop.xlane.xlu0 %1254
    %v1256 = vsel %vm283, %v1248, -inf
    %1257 = vmax.xlane.f32.xlu0 %v1256
    %v1258 = vpop.xlane.xlu0 %1257
    %v1259 = vsub.f32 %v1202, %v1255
    %v1260 = vsub.f32 %v1248, %v1258
    %v1261 = vmul.f32 %v1259, 1.442695
    %v1262 = vpow.pop %v1261
    %v1263 = vmul.f32 %v1260, 1.442695
    %v1264 = vpow.pop %v1263
    %v1265 = vsel %vm283, %v1262, 0.0
    %1266 = vadd.xlane.f32.xlu0 %v1265
    %v1267 = vpop.xlane.xlu0 %1266
    %v1268 = vsel %vm283, %v1264, 0.0
    %1269 = vadd.xlane.f32.xlu0 %v1268
    %v1270 = vpop.xlane.xlu0 %1269
    %v1271 = vrcp.pop %v1267
    %v1272 = vrcp.pop %v1270
    %v1273 = vmul.f32 %v1262, %v1271
    %v1274 = vmul.f32 %v1264, %v1272
    %v1275 = vpack.c.bf16 %v1273, %v1273
    %v1276 = vpack.c.bf16 %v1274, %v1274
    %v1277 = vpack.c.bf16 %v1151, %v1151
    %v1278 = vpack.c.bf16 %v1154, %v1154
    %v1280 = vsel %vm283, %v1275, 0
    %v1283 = vsel %vm405, %v1277, 0
    %1285 = vmatprep.subr.bf16.mxu0 0
    %1286 = vmatpush1.bf16.msra.mxu0 0
    %1287 = vmatprep.subr.bf16.mxu0 0
    %1288 = vmatpush1.bf16.msra.mxu0 0
    %1289 = vmatprep.subr.bf16.mxu0 0
    %1290 = vmatpush1.bf16.msra.mxu0 0
    %1291 = vmatprep.subr.bf16.mxu0 0
    %1292 = vmatpush1.bf16.msra.mxu0 0
    %1293 = vmatprep.subr.bf16.mxu0 0
    %1294 = vmatpush1.bf16.msra.mxu0 0
    %1295 = vmatprep.subr.bf16.mxu0 0
    %1296 = vmatpush1.bf16.msra.mxu0 0
    %1297 = vmatprep.subr.bf16.mxu0 0
    %1298 = vmatpush1.bf16.msra.mxu0 0
    %1299 = vmatprep.subr.bf16.mxu0 0
    %1300 = vmatpush1.bf16.msra.mxu0 %v1283
    %1301 = vmatprep.subr.bf16.mxu0 0
    %1302 = vmatpush2.bf16.msra.mxu0 0
    %1303 = vmatprep.subr.bf16.mxu0 0
    %1304 = vmatpush2.bf16.msra.mxu0 0
    %1305 = vmatprep.subr.bf16.mxu0 0
    %1306 = vmatpush2.bf16.msra.mxu0 0
    %1307 = vmatprep.subr.bf16.mxu0 0
    %1308 = vmatpush2.bf16.msra.mxu0 0
    %1309 = vmatprep.subr.bf16.mxu0 0
    %1310 = vmatpush2.bf16.msra.mxu0 0
    %1311 = vmatprep.subr.bf16.mxu0 0
    %1312 = vmatpush2.bf16.msra.mxu0 0
    %1313 = vmatprep.subr.bf16.mxu0 0
    %1314 = vmatpush2.bf16.msra.mxu0 0
    %1315 = vmatprep.subr.bf16.mxu0 0
    %1316 = vmatpush2.bf16.msra.mxu0 0
    %1317 = vmatprep.mubr.bf16.mxu0 0
    %1318 = vmatmul.mubr.bf16.gmra.mxu0 %v1280
    %v1319 = vpop.f32.mrf.mxu0
    %v1320 = vadd.f32 0.0, %v1319
    %v1321 = vpop.f32.mrf.mxu0
    %v1322 = vpop.f32.mrf.mxu0
    %v1323 = vpop.f32.mrf.mxu0
    %1324 = vdwg.mxu0
    %v1326 = vsel %vm283, %v1276, 0
    %v1329 = vsel %vm405, %v1278, 0
    %1331 = vmatprep.subr.bf16.mxu0 0
    %1332 = vmatpush1.bf16.msra.mxu0 0
    %1333 = vmatprep.subr.bf16.mxu0 0
    %1334 = vmatpush1.bf16.msra.mxu0 0
    %1335 = vmatprep.subr.bf16.mxu0 0
    %1336 = vmatpush1.bf16.msra.mxu0 0
    %1337 = vmatprep.subr.bf16.mxu0 0
    %1338 = vmatpush1.bf16.msra.mxu0 0
    %1339 = vmatprep.subr.bf16.mxu0 0
    %1340 = vmatpush1.bf16.msra.mxu0 0
    %1341 = vmatprep.subr.bf16.mxu0 0
    %1342 = vmatpush1.bf16.msra.mxu0 0
    %1343 = vmatprep.subr.bf16.mxu0 0
    %1344 = vmatpush1.bf16.msra.mxu0 0
    %1345 = vmatprep.subr.bf16.mxu0 0
    %1346 = vmatpush1.bf16.msra.mxu0 %v1329
    %1347 = vmatprep.subr.bf16.mxu0 0
    %1348 = vmatpush2.bf16.msra.mxu0 0
    %1349 = vmatprep.subr.bf16.mxu0 0
    %1350 = vmatpush2.bf16.msra.mxu0 0
    %1351 = vmatprep.subr.bf16.mxu0 0
    %1352 = vmatpush2.bf16.msra.mxu0 0
    %1353 = vmatprep.subr.bf16.mxu0 0
    %1354 = vmatpush2.bf16.msra.mxu0 0
    %1355 = vmatprep.subr.bf16.mxu0 0
    %1356 = vmatpush2.bf16.msra.mxu0 0
    %1357 = vmatprep.subr.bf16.mxu0 0
    %1358 = vmatpush2.bf16.msra.mxu0 0
    %1359 = vmatprep.subr.bf16.mxu0 0
    %1360 = vmatpush2.bf16.msra.mxu0 0
    %1361 = vmatprep.subr.bf16.mxu0 0
    %1362 = vmatpush2.bf16.msra.mxu0 0
    %1363 = vmatprep.mubr.bf16.mxu0 0
    %1364 = vmatmul.mubr.bf16.gmra.mxu0 %v1326
    %v1365 = vpop.f32.mrf.mxu0
    %v1366 = vadd.f32 0.0, %v1365
    %v1367 = vpop.f32.mrf.mxu0
    %v1368 = vpop.f32.mrf.mxu0
    %v1369 = vpop.f32.mrf.mxu0
    %1370 = vdwg.mxu0
    %v1371 = vpack.c.bf16 %v1366, %v1320
    %v1373 = vsel %vm283, %v1371, 0
    %v1376 = vsel %vm405, %v997, 0
    %1378 = vmatprep.subr.bf16.mxu0 0
    %1379 = vmatpush1.bf16.msra.mxu0 0
    %1380 = vmatprep.subr.bf16.mxu0 0
    %1381 = vmatpush1.bf16.msra.mxu0 0
    %1382 = vmatprep.subr.bf16.mxu0 0
    %1383 = vmatpush1.bf16.msra.mxu0 0
    %1384 = vmatprep.subr.bf16.mxu0 0
    %1385 = vmatpush1.bf16.msra.mxu0 0
    %1386 = vmatprep.subr.bf16.mxu0 0
    %1387 = vmatpush1.bf16.msra.mxu0 0
    %1388 = vmatprep.subr.bf16.mxu0 0
    %1389 = vmatpush1.bf16.msra.mxu0 0
    %1390 = vmatprep.subr.bf16.mxu0 0
    %1391 = vmatpush1.bf16.msra.mxu0 0
    %1392 = vmatprep.subr.bf16.mxu0 0
    %1393 = vmatpush1.bf16.msra.mxu0 %v1376
    %1394 = vmatprep.subr.bf16.mxu0 0
    %1395 = vmatpush2.bf16.msra.mxu0 0
    %1396 = vmatprep.subr.bf16.mxu0 0
    %1397 = vmatpush2.bf16.msra.mxu0 0
    %1398 = vmatprep.subr.bf16.mxu0 0
    %1399 = vmatpush2.bf16.msra.mxu0 0
    %1400 = vmatprep.subr.bf16.mxu0 0
    %1401 = vmatpush2.bf16.msra.mxu0 0
    %1402 = vmatprep.subr.bf16.mxu0 0
    %1403 = vmatpush2.bf16.msra.mxu0 0
    %1404 = vmatprep.subr.bf16.mxu0 0
    %1405 = vmatpush2.bf16.msra.mxu0 0
    %1406 = vmatprep.subr.bf16.mxu0 0
    %1407 = vmatpush2.bf16.msra.mxu0 0
    %1408 = vmatprep.subr.bf16.mxu0 0
    %1409 = vmatpush2.bf16.msra.mxu0 0
    %1410 = vmatprep.mubr.bf16.mxu0 0
    %1411 = vmatmul.mubr.bf16.gmra.mxu0 %v1373
    %v1412 = vpop.f32.mrf.mxu0
    %v1413 = vadd.f32 0.0, %v1412
    %v1414 = vpop.f32.mrf.mxu0
    %v1415 = vpop.f32.mrf.mxu0
    %v1416 = vadd.f32 0.0, %v1415
    %v1417 = vpop.f32.mrf.mxu0
    %1418 = vdwg.mxu0
    %v1419 = vadd.f32 %v975, %v1413
    %v1420 = vadd.f32 %v978, %v1416
    %s1421 = scalar_lea.vmem %s3, 48
    %v1422 = vld [vmem:[%s1421] sm:$0xf]
    %v1423 = vld [vmem:[%s1421 + $0x4] sm:$0xf]
    %v1424 = vld [vmem:[%s1421 + $0x8] sm:$0xf]
    %v1425 = vld [vmem:[%s1421 + $0xc] sm:$0xf]
    %s1426 = scalar_lea.vmem %s4, 48
    %v1427 = vld [vmem:[%s1426] sm:$0xf]
    %v1428 = vld [vmem:[%s1426 + $0x4] sm:$0xf]
    %v1429 = vld [vmem:[%s1426 + $0x8] sm:$0xf]
    %v1430 = vld [vmem:[%s1426 + $0xc] sm:$0xf]
    %s1431 = scalar_lea.vmem %s5, 48
    %v1432 = vld [vmem:[%s1431] sm:$0xf]
    %v1433 = vld [vmem:[%s1431 + $0x4] sm:$0xf]
    %v1434 = vld [vmem:[%s1431 + $0x8] sm:$0xf]
    %v1435 = vld [vmem:[%s1431 + $0xc] sm:$0xf]
    %s1436 = scalar_lea.vmem %s6, 12
    %v1437 = vld [vmem:[%s1436] sm:$0xf]
    %v1442 = vunpack.c.l.b16 %v1422
    %v1443 = vunpack.c.l.b16 %v1423
    %v1444 = vunpack.c.l.b16 %v1424
    %v1445 = vunpack.c.l.b16 %v1425
    %v1446 = vpack.c.b16 %v1443, %v1442
    %v1447 = vpack.c.b16 %v1445, %v1444
    %1450 = vmatprep.subr.bf16.mxu0 0
    %1451 = vmatpush1.bf16.msra.mxu0 0
    %1452 = vmatprep.subr.bf16.mxu0 0
    %1453 = vmatpush1.bf16.msra.mxu0 0
    %1454 = vmatprep.subr.bf16.mxu0 0
    %1455 = vmatpush1.bf16.msra.mxu0 0
    %1456 = vmatprep.subr.bf16.mxu0 0
    %1457 = vmatpush1.bf16.msra.mxu0 0
    %1458 = vmatprep.subr.bf16.mxu0 0
    %1459 = vmatpush1.bf16.msra.mxu0 0
    %1460 = vmatprep.subr.bf16.mxu0 0
    %1461 = vmatpush1.bf16.msra.mxu0 0
    %1462 = vmatprep.subr.bf16.mxu0 0
    %1463 = vmatpush1.bf16.msra.mxu0 %v1447
    %1464 = vmatprep.subr.bf16.mxu0 0
    %1465 = vmatpush1.bf16.msra.mxu0 %v1446
    %1466 = vmatprep.subr.bf16.mxu0 0
    %1467 = vmatpush2.bf16.msra.mxu0 0
    %1468 = vmatprep.subr.bf16.mxu0 0
    %1469 = vmatpush2.bf16.msra.mxu0 0
    %1470 = vmatprep.subr.bf16.mxu0 0
    %1471 = vmatpush2.bf16.msra.mxu0 0
    %1472 = vmatprep.subr.bf16.mxu0 0
    %1473 = vmatpush2.bf16.msra.mxu0 0
    %1474 = vmatprep.subr.bf16.mxu0 0
    %1475 = vmatpush2.bf16.msra.mxu0 0
    %1476 = vmatprep.subr.bf16.mxu0 0
    %1477 = vmatpush2.bf16.msra.mxu0 0
    %1478 = vmatprep.subr.bf16.mxu0 0
    %1479 = vmatpush2.bf16.msra.mxu0 0
    %1480 = vmatprep.subr.bf16.mxu0 0
    %1481 = vmatpush2.bf16.msra.mxu0 0
    %1482 = vmatprep.mubr.bf16.mxu0 0
    %1483 = vmatmul.mubr.bf16.gmra.mxu0 %v130
    %v1484 = vpop.f32.mrf.mxu0
    %v1485 = vadd.f32 0.0, %v1484
    %v1486 = vpop.f32.mrf.mxu0
    %v1487 = vpop.f32.mrf.mxu0
    %v1488 = vadd.f32 0.0, %v1487
    %v1489 = vpop.f32.mrf.mxu0
    %1490 = vdwg.mxu0
    %v1495 = vunpack.c.l.b16 %v1427
    %v1496 = vunpack.c.l.b16 %v1428
    %v1497 = vunpack.c.l.b16 %v1429
    %v1498 = vunpack.c.l.b16 %v1430
    %v1499 = vpack.c.b16 %v1496, %v1495
    %v1500 = vpack.c.b16 %v1498, %v1497
    %1503 = vmatprep.subr.bf16.mxu0 0
    %1504 = vmatpush1.bf16.msra.mxu0 0
    %1505 = vmatprep.subr.bf16.mxu0 0
    %1506 = vmatpush1.bf16.msra.mxu0 0
    %1507 = vmatprep.subr.bf16.mxu0 0
    %1508 = vmatpush1.bf16.msra.mxu0 0
    %1509 = vmatprep.subr.bf16.mxu0 0
    %1510 = vmatpush1.bf16.msra.mxu0 0
    %1511 = vmatprep.subr.bf16.mxu0 0
    %1512 = vmatpush1.bf16.msra.mxu0 0
    %1513 = vmatprep.subr.bf16.mxu0 0
    %1514 = vmatpush1.bf16.msra.mxu0 0
    %1515 = vmatprep.subr.bf16.mxu0 0
    %1516 = vmatpush1.bf16.msra.mxu0 %v1500
    %1517 = vmatprep.subr.bf16.mxu0 0
    %1518 = vmatpush1.bf16.msra.mxu0 %v1499
    %1519 = vmatprep.subr.bf16.mxu0 0
    %1520 = vmatpush2.bf16.msra.mxu0 0
    %1521 = vmatprep.subr.bf16.mxu0 0
    %1522 = vmatpush2.bf16.msra.mxu0 0
    %1523 = vmatprep.subr.bf16.mxu0 0
    %1524 = vmatpush2.bf16.msra.mxu0 0
    %1525 = vmatprep.subr.bf16.mxu0 0
    %1526 = vmatpush2.bf16.msra.mxu0 0
    %1527 = vmatprep.subr.bf16.mxu0 0
    %1528 = vmatpush2.bf16.msra.mxu0 0
    %1529 = vmatprep.subr.bf16.mxu0 0
    %1530 = vmatpush2.bf16.msra.mxu0 0
    %1531 = vmatprep.subr.bf16.mxu0 0
    %1532 = vmatpush2.bf16.msra.mxu0 0
    %1533 = vmatprep.subr.bf16.mxu0 0
    %1534 = vmatpush2.bf16.msra.mxu0 0
    %1535 = vmatprep.mubr.bf16.mxu0 0
    %1536 = vmatmul.mubr.bf16.gmra.mxu0 %v130
    %v1537 = vpop.f32.mrf.mxu0
    %v1538 = vadd.f32 0.0, %v1537
    %v1539 = vpop.f32.mrf.mxu0
    %v1540 = vpop.f32.mrf.mxu0
    %v1541 = vadd.f32 0.0, %v1540
    %v1542 = vpop.f32.mrf.mxu0
    %1543 = vdwg.mxu0
    %v1548 = vunpack.c.l.b16 %v1432
    %v1549 = vunpack.c.l.b16 %v1433
    %v1550 = vunpack.c.l.b16 %v1434
    %v1551 = vunpack.c.l.b16 %v1435
    %v1552 = vpack.c.b16 %v1549, %v1548
    %v1553 = vpack.c.b16 %v1551, %v1550
    %1556 = vmatprep.subr.bf16.mxu0 0
    %1557 = vmatpush1.bf16.msra.mxu0 0
    %1558 = vmatprep.subr.bf16.mxu0 0
    %1559 = vmatpush1.bf16.msra.mxu0 0
    %1560 = vmatprep.subr.bf16.mxu0 0
    %1561 = vmatpush1.bf16.msra.mxu0 0
    %1562 = vmatprep.subr.bf16.mxu0 0
    %1563 = vmatpush1.bf16.msra.mxu0 0
    %1564 = vmatprep.subr.bf16.mxu0 0
    %1565 = vmatpush1.bf16.msra.mxu0 0
    %1566 = vmatprep.subr.bf16.mxu0 0
    %1567 = vmatpush1.bf16.msra.mxu0 0
    %1568 = vmatprep.subr.bf16.mxu0 0
    %1569 = vmatpush1.bf16.msra.mxu0 %v1553
    %1570 = vmatprep.subr.bf16.mxu0 0
    %1571 = vmatpush1.bf16.msra.mxu0 %v1552
    %1572 = vmatprep.subr.bf16.mxu0 0
    %1573 = vmatpush2.bf16.msra.mxu0 0
    %1574 = vmatprep.subr.bf16.mxu0 0
    %1575 = vmatpush2.bf16.msra.mxu0 0
    %1576 = vmatprep.subr.bf16.mxu0 0
    %1577 = vmatpush2.bf16.msra.mxu0 0
    %1578 = vmatprep.subr.bf16.mxu0 0
    %1579 = vmatpush2.bf16.msra.mxu0 0
    %1580 = vmatprep.subr.bf16.mxu0 0
    %1581 = vmatpush2.bf16.msra.mxu0 0
    %1582 = vmatprep.subr.bf16.mxu0 0
    %1583 = vmatpush2.bf16.msra.mxu0 0
    %1584 = vmatprep.subr.bf16.mxu0 0
    %1585 = vmatpush2.bf16.msra.mxu0 0
    %1586 = vmatprep.subr.bf16.mxu0 0
    %1587 = vmatpush2.bf16.msra.mxu0 0
    %1588 = vmatprep.mubr.bf16.mxu0 0
    %1589 = vmatmul.mubr.bf16.gmra.mxu0 %v130
    %v1590 = vpop.f32.mrf.mxu0
    %v1591 = vadd.f32 0.0, %v1590
    %v1592 = vpop.f32.mrf.mxu0
    %v1593 = vpop.f32.mrf.mxu0
    %v1594 = vadd.f32 0.0, %v1593
    %v1595 = vpop.f32.mrf.mxu0
    %1596 = vdwg.mxu0
    %v1597 = vpack.c.bf16 %v1485, %v1485
    %v1598 = vpack.c.bf16 %v1488, %v1488
    %v1599 = vpack.c.bf16 %v1538, %v1538
    %v1600 = vpack.c.bf16 %v1541, %v1541
    %v1602 = vsel %vm283, %v1597, 0
    %v1605 = vsel %vm283, %v1599, 0
    %1607 = vmatprep.subr.bf16.mxu0 0
    %1608 = vmatpush1.bf16.xpose.msra.mxu0 0
    %1609 = vmatprep.subr.bf16.mxu0 0
    %1610 = vmatpush1.bf16.xpose.msra.mxu0 0
    %1611 = vmatprep.subr.bf16.mxu0 0
    %1612 = vmatpush1.bf16.xpose.msra.mxu0 0
    %1613 = vmatprep.subr.bf16.mxu0 0
    %1614 = vmatpush1.bf16.xpose.msra.mxu0 0
    %1615 = vmatprep.subr.bf16.mxu0 0
    %1616 = vmatpush1.bf16.xpose.msra.mxu0 0
    %1617 = vmatprep.subr.bf16.mxu0 0
    %1618 = vmatpush1.bf16.xpose.msra.mxu0 0
    %1619 = vmatprep.subr.bf16.mxu0 0
    %1620 = vmatpush1.bf16.xpose.msra.mxu0 0
    %1621 = vmatprep.subr.bf16.mxu0 0
    %1622 = vmatpush1.bf16.xpose.msra.mxu0 %v1605
    %1623 = vmatprep.subr.bf16.mxu0 0
    %1624 = vmatpush2.bf16.xpose.msra.mxu0 0
    %1625 = vmatprep.subr.bf16.mxu0 0
    %1626 = vmatpush2.bf16.xpose.msra.mxu0 0
    %1627 = vmatprep.subr.bf16.mxu0 0
    %1628 = vmatpush2.bf16.xpose.msra.mxu0 0
    %1629 = vmatprep.subr.bf16.mxu0 0
    %1630 = vmatpush2.bf16.xpose.msra.mxu0 0
    %1631 = vmatprep.subr.bf16.mxu0 0
    %1632 = vmatpush2.bf16.xpose.msra.mxu0 0
    %1633 = vmatprep.subr.bf16.mxu0 0
    %1634 = vmatpush2.bf16.xpose.msra.mxu0 0
    %1635 = vmatprep.subr.bf16.mxu0 0
    %1636 = vmatpush2.bf16.xpose.msra.mxu0 0
    %1637 = vmatprep.subr.bf16.mxu0 0
    %1638 = vmatpush2.bf16.xpose.msra.mxu0 0
    %1639 = vmatprep.mubr.bf16.mxu0 0
    %1640 = vmatmul.mubr.bf16.gmra.mxu0 %v1602
    %v1641 = vpop.f32.mrf.mxu0
    %v1642 = vadd.f32 %v103, %v1641
    %v1643 = vpop.f32.mrf.mxu0
    %v1644 = vpop.f32.mrf.mxu0
    %v1645 = vpop.f32.mrf.mxu0
    %1646 = vdwg.mxu0
    %v1648 = vsel %vm283, %v1598, 0
    %v1651 = vsel %vm283, %v1600, 0
    %1653 = vmatprep.subr.bf16.mxu0 0
    %1654 = vmatpush1.bf16.xpose.msra.mxu0 0
    %1655 = vmatprep.subr.bf16.mxu0 0
    %1656 = vmatpush1.bf16.xpose.msra.mxu0 0
    %1657 = vmatprep.subr.bf16.mxu0 0
    %1658 = vmatpush1.bf16.xpose.msra.mxu0 0
    %1659 = vmatprep.subr.bf16.mxu0 0
    %1660 = vmatpush1.bf16.xpose.msra.mxu0 0
    %1661 = vmatprep.subr.bf16.mxu0 0
    %1662 = vmatpush1.bf16.xpose.msra.mxu0 0
    %1663 = vmatprep.subr.bf16.mxu0 0
    %1664 = vmatpush1.bf16.xpose.msra.mxu0 0
    %1665 = vmatprep.subr.bf16.mxu0 0
    %1666 = vmatpush1.bf16.xpose.msra.mxu0 0
    %1667 = vmatprep.subr.bf16.mxu0 0
    %1668 = vmatpush1.bf16.xpose.msra.mxu0 %v1651
    %1669 = vmatprep.subr.bf16.mxu0 0
    %1670 = vmatpush2.bf16.xpose.msra.mxu0 0
    %1671 = vmatprep.subr.bf16.mxu0 0
    %1672 = vmatpush2.bf16.xpose.msra.mxu0 0
    %1673 = vmatprep.subr.bf16.mxu0 0
    %1674 = vmatpush2.bf16.xpose.msra.mxu0 0
    %1675 = vmatprep.subr.bf16.mxu0 0
    %1676 = vmatpush2.bf16.xpose.msra.mxu0 0
    %1677 = vmatprep.subr.bf16.mxu0 0
    %1678 = vmatpush2.bf16.xpose.msra.mxu0 0
    %1679 = vmatprep.subr.bf16.mxu0 0
    %1680 = vmatpush2.bf16.xpose.msra.mxu0 0
    %1681 = vmatprep.subr.bf16.mxu0 0
    %1682 = vmatpush2.bf16.xpose.msra.mxu0 0
    %1683 = vmatprep.subr.bf16.mxu0 0
    %1684 = vmatpush2.bf16.xpose.msra.mxu0 0
    %1685 = vmatprep.mubr.bf16.mxu0 0
    %1686 = vmatmul.mubr.bf16.gmra.mxu0 %v1648
    %v1687 = vpop.f32.mrf.mxu0
    %v1688 = vadd.f32 %v103, %v1687
    %v1689 = vpop.f32.mrf.mxu0
    %v1690 = vpop.f32.mrf.mxu0
    %v1691 = vpop.f32.mrf.mxu0
    %1692 = vdwg.mxu0
    %v1693 = vsel %vm283, %v1642, -inf
    %1694 = vmax.xlane.f32.xlu0 %v1693
    %v1695 = vpop.xlane.xlu0 %1694
    %v1696 = vsel %vm283, %v1688, -inf
    %1697 = vmax.xlane.f32.xlu0 %v1696
    %v1698 = vpop.xlane.xlu0 %1697
    %v1699 = vsub.f32 %v1642, %v1695
    %v1700 = vsub.f32 %v1688, %v1698
    %v1701 = vmul.f32 %v1699, 1.442695
    %v1702 = vpow.pop %v1701
    %v1703 = vmul.f32 %v1700, 1.442695
    %v1704 = vpow.pop %v1703
    %v1705 = vsel %vm283, %v1702, 0.0
    %1706 = vadd.xlane.f32.xlu0 %v1705
    %v1707 = vpop.xlane.xlu0 %1706
    %v1708 = vsel %vm283, %v1704, 0.0
    %1709 = vadd.xlane.f32.xlu0 %v1708
    %v1710 = vpop.xlane.xlu0 %1709
    %v1711 = vrcp.pop %v1707
    %v1712 = vrcp.pop %v1710
    %v1713 = vmul.f32 %v1702, %v1711
    %v1714 = vmul.f32 %v1704, %v1712
    %v1715 = vpack.c.bf16 %v1713, %v1713
    %v1716 = vpack.c.bf16 %v1714, %v1714
    %v1717 = vpack.c.bf16 %v1591, %v1591
    %v1718 = vpack.c.bf16 %v1594, %v1594
    %v1720 = vsel %vm283, %v1715, 0
    %v1723 = vsel %vm405, %v1717, 0
    %1725 = vmatprep.subr.bf16.mxu0 0
    %1726 = vmatpush1.bf16.msra.mxu0 0
    %1727 = vmatprep.subr.bf16.mxu0 0
    %1728 = vmatpush1.bf16.msra.mxu0 0
    %1729 = vmatprep.subr.bf16.mxu0 0
    %1730 = vmatpush1.bf16.msra.mxu0 0
    %1731 = vmatprep.subr.bf16.mxu0 0
    %1732 = vmatpush1.bf16.msra.mxu0 0
    %1733 = vmatprep.subr.bf16.mxu0 0
    %1734 = vmatpush1.bf16.msra.mxu0 0
    %1735 = vmatprep.subr.bf16.mxu0 0
    %1736 = vmatpush1.bf16.msra.mxu0 0
    %1737 = vmatprep.subr.bf16.mxu0 0
    %1738 = vmatpush1.bf16.msra.mxu0 0
    %1739 = vmatprep.subr.bf16.mxu0 0
    %1740 = vmatpush1.bf16.msra.mxu0 %v1723
    %1741 = vmatprep.subr.bf16.mxu0 0
    %1742 = vmatpush2.bf16.msra.mxu0 0
    %1743 = vmatprep.subr.bf16.mxu0 0
    %1744 = vmatpush2.bf16.msra.mxu0 0
    %1745 = vmatprep.subr.bf16.mxu0 0
    %1746 = vmatpush2.bf16.msra.mxu0 0
    %1747 = vmatprep.subr.bf16.mxu0 0
    %1748 = vmatpush2.bf16.msra.mxu0 0
    %1749 = vmatprep.subr.bf16.mxu0 0
    %1750 = vmatpush2.bf16.msra.mxu0 0
    %1751 = vmatprep.subr.bf16.mxu0 0
    %1752 = vmatpush2.bf16.msra.mxu0 0
    %1753 = vmatprep.subr.bf16.mxu0 0
    %1754 = vmatpush2.bf16.msra.mxu0 0
    %1755 = vmatprep.subr.bf16.mxu0 0
    %1756 = vmatpush2.bf16.msra.mxu0 0
    %1757 = vmatprep.mubr.bf16.mxu0 0
    %1758 = vmatmul.mubr.bf16.gmra.mxu0 %v1720
    %v1759 = vpop.f32.mrf.mxu0
    %v1760 = vadd.f32 0.0, %v1759
    %v1761 = vpop.f32.mrf.mxu0
    %v1762 = vpop.f32.mrf.mxu0
    %v1763 = vpop.f32.mrf.mxu0
    %1764 = vdwg.mxu0
    %v1766 = vsel %vm283, %v1716, 0
    %v1769 = vsel %vm405, %v1718, 0
    %1771 = vmatprep.subr.bf16.mxu0 0
    %1772 = vmatpush1.bf16.msra.mxu0 0
    %1773 = vmatprep.subr.bf16.mxu0 0
    %1774 = vmatpush1.bf16.msra.mxu0 0
    %1775 = vmatprep.subr.bf16.mxu0 0
    %1776 = vmatpush1.bf16.msra.mxu0 0
    %1777 = vmatprep.subr.bf16.mxu0 0
    %1778 = vmatpush1.bf16.msra.mxu0 0
    %1779 = vmatprep.subr.bf16.mxu0 0
    %1780 = vmatpush1.bf16.msra.mxu0 0
    %1781 = vmatprep.subr.bf16.mxu0 0
    %1782 = vmatpush1.bf16.msra.mxu0 0
    %1783 = vmatprep.subr.bf16.mxu0 0
    %1784 = vmatpush1.bf16.msra.mxu0 0
    %1785 = vmatprep.subr.bf16.mxu0 0
    %1786 = vmatpush1.bf16.msra.mxu0 %v1769
    %1787 = vmatprep.subr.bf16.mxu0 0
    %1788 = vmatpush2.bf16.msra.mxu0 0
    %1789 = vmatprep.subr.bf16.mxu0 0
    %1790 = vmatpush2.bf16.msra.mxu0 0
    %1791 = vmatprep.subr.bf16.mxu0 0
    %1792 = vmatpush2.bf16.msra.mxu0 0
    %1793 = vmatprep.subr.bf16.mxu0 0
    %1794 = vmatpush2.bf16.msra.mxu0 0
    %1795 = vmatprep.subr.bf16.mxu0 0
    %1796 = vmatpush2.bf16.msra.mxu0 0
    %1797 = vmatprep.subr.bf16.mxu0 0
    %1798 = vmatpush2.bf16.msra.mxu0 0
    %1799 = vmatprep.subr.bf16.mxu0 0
    %1800 = vmatpush2.bf16.msra.mxu0 0
    %1801 = vmatprep.subr.bf16.mxu0 0
    %1802 = vmatpush2.bf16.msra.mxu0 0
    %1803 = vmatprep.mubr.bf16.mxu0 0
    %1804 = vmatmul.mubr.bf16.gmra.mxu0 %v1766
    %v1805 = vpop.f32.mrf.mxu0
    %v1806 = vadd.f32 0.0, %v1805
    %v1807 = vpop.f32.mrf.mxu0
    %v1808 = vpop.f32.mrf.mxu0
    %v1809 = vpop.f32.mrf.mxu0
    %1810 = vdwg.mxu0
    %v1811 = vpack.c.bf16 %v1806, %v1760
    %v1813 = vsel %vm283, %v1811, 0
    %v1816 = vsel %vm405, %v1437, 0
    %1818 = vmatprep.subr.bf16.mxu0 0
    %1819 = vmatpush1.bf16.msra.mxu0 0
    %1820 = vmatprep.subr.bf16.mxu0 0
    %1821 = vmatpush1.bf16.msra.mxu0 0
    %1822 = vmatprep.subr.bf16.mxu0 0
    %1823 = vmatpush1.bf16.msra.mxu0 0
    %1824 = vmatprep.subr.bf16.mxu0 0
    %1825 = vmatpush1.bf16.msra.mxu0 0
    %1826 = vmatprep.subr.bf16.mxu0 0
    %1827 = vmatpush1.bf16.msra.mxu0 0
    %1828 = vmatprep.subr.bf16.mxu0 0
    %1829 = vmatpush1.bf16.msra.mxu0 0
    %1830 = vmatprep.subr.bf16.mxu0 0
    %1831 = vmatpush1.bf16.msra.mxu0 0
    %1832 = vmatprep.subr.bf16.mxu0 0
    %1833 = vmatpush1.bf16.msra.mxu0 %v1816
    %1834 = vmatprep.subr.bf16.mxu0 0
    %1835 = vmatpush2.bf16.msra.mxu0 0
    %1836 = vmatprep.subr.bf16.mxu0 0
    %1837 = vmatpush2.bf16.msra.mxu0 0
    %1838 = vmatprep.subr.bf16.mxu0 0
    %1839 = vmatpush2.bf16.msra.mxu0 0
    %1840 = vmatprep.subr.bf16.mxu0 0
    %1841 = vmatpush2.bf16.msra.mxu0 0
    %1842 = vmatprep.subr.bf16.mxu0 0
    %1843 = vmatpush2.bf16.msra.mxu0 0
    %1844 = vmatprep.subr.bf16.mxu0 0
    %1845 = vmatpush2.bf16.msra.mxu0 0
    %1846 = vmatprep.subr.bf16.mxu0 0
    %1847 = vmatpush2.bf16.msra.mxu0 0
    %1848 = vmatprep.subr.bf16.mxu0 0
    %1849 = vmatpush2.bf16.msra.mxu0 0
    %1850 = vmatprep.mubr.bf16.mxu0 0
    %1851 = vmatmul.mubr.bf16.gmra.mxu0 %v1813
    %v1852 = vpop.f32.mrf.mxu0
    %v1853 = vadd.f32 0.0, %v1852
    %v1854 = vpop.f32.mrf.mxu0
    %v1855 = vpop.f32.mrf.mxu0
    %v1856 = vadd.f32 0.0, %v1855
    %v1857 = vpop.f32.mrf.mxu0
    %1858 = vdwg.mxu0
    %v1859 = vadd.f32 %v1419, %v1853
    %v1860 = vadd.f32 %v1420, %v1856
    %v1861 = vld [vmem:[%s7] sm:$0x1]
    %v1863 = vlaneseq
    %v1864 = vshrl.u32 %v1863, 7
    %v1865 = vsub.s32 0, %v1864
    %v1866 = vrot.slane %v1861, %v1865
    %v1868 = vadd.f32 %v1859, %v1866
    %v1869 = vadd.f32 %v1860, %v1866
    %v1870 = vadd.f32 %v49, %v1868
    %v1871 = vadd.f32 %v50, %v1869
    %v1872 = vld [vmem:[%s8] sm:$0x1]
    %v1873 = vld [vmem:[%s9] sm:$0x1]
    %v1874 = vsel %vm53, %v1870, 0.0
    %1875 = vadd.xlane.f32.xlu0 %v1874
    %v1876 = vpop.xlane.xlu0 %1875
    %v1877 = vsel %vm53, %v1871, 0.0
    %1878 = vadd.xlane.f32.xlu0 %v1877
    %v1879 = vpop.xlane.xlu0 %1878
    %v1880 = vmul.f32 %v1876, %v60
    %v1881 = vmul.f32 %v1879, %v60
    %v1882 = vsub.f32 %v1870, %v1880
    %v1883 = vsub.f32 %v1871, %v1881
    %v1884 = vmul.f32 %v1882, %v1882
    %v1885 = vmul.f32 %v1883, %v1883
    %v1886 = vsel %vm53, %v1884, 0.0
    %1887 = vadd.xlane.f32.xlu0 %v1886
    %v1888 = vpop.xlane.xlu0 %1887
    %v1889 = vsel %vm53, %v1885, 0.0
    %1890 = vadd.xlane.f32.xlu0 %v1889
    %v1891 = vpop.xlane.xlu0 %1890
    %v1892 = vmul.f32 %v1888, %v60
    %v1893 = vmul.f32 %v1891, %v60
    %v1894 = vadd.f32 %v1892, 1e-05
    %v1895 = vadd.f32 %v1893, 1e-05
    %v1896 = vrsqrt.pop %v1894
    %v1897 = vrsqrt.pop %v1895
    %v1898 = vmul.f32 %v1882, %v1896
    %v1899 = vmul.f32 %v1883, %v1897
    %v1901 = vlaneseq
    %v1902 = vshrl.u32 %v1901, 7
    %v1903 = vsub.s32 0, %v1902
    %v1904 = vrot.slane %v1872, %v1903
    %v1906 = vmul.f32 %v1898, %v1904
    %v1907 = vmul.f32 %v1899, %v1904
    %v1909 = vlaneseq
    %v1910 = vshrl.u32 %v1909, 7
    %v1911 = vsub.s32 0, %v1910
    %v1912 = vrot.slane %v1873, %v1911
    %v1914 = vadd.f32 %v1906, %v1912
    %v1915 = vadd.f32 %v1907, %v1912
    %v1916 = vpack.c.bf16 %v1915, %v1914
    %v1917 = vld [vmem:[%s10] sm:$0xf]
    %v1918 = vld [vmem:[%s10 + $0x4] sm:$0xf]
    %v1919 = vld [vmem:[%s10 + $0x8] sm:$0xf]
    %v1920 = vld [vmem:[%s10 + $0xc] sm:$0xf]
    %v1921 = vld [vmem:[%s11] sm:$0x1]
    %v1923 = vlaneseq
    %v1924 = vshrl.u32 %v1923, 7
    %v1925 = vsub.s32 0, %v1924
    %v1926 = vrot.slane %v1921, %v1925
    %v1932 = vunpack.c.l.b16 %v1917
    %v1933 = vunpack.c.l.b16 %v1918
    %v1934 = vunpack.c.l.b16 %v1919
    %v1935 = vunpack.c.l.b16 %v1920
    %v1936 = vpack.c.b16 %v1933, %v1932
    %v1937 = vpack.c.b16 %v1935, %v1934
    %v1941 = vsel %vm53, %v1916, 0
    %1943 = vmatprep.subr.bf16.mxu0 0
    %1944 = vmatpush1.bf16.msra.mxu0 0
    %1945 = vmatprep.subr.bf16.mxu0 0
    %1946 = vmatpush1.bf16.msra.mxu0 0
    %1947 = vmatprep.subr.bf16.mxu0 0
    %1948 = vmatpush1.bf16.msra.mxu0 0
    %1949 = vmatprep.subr.bf16.mxu0 0
    %1950 = vmatpush1.bf16.msra.mxu0 0
    %1951 = vmatprep.subr.bf16.mxu0 0
    %1952 = vmatpush1.bf16.msra.mxu0 0
    %1953 = vmatprep.subr.bf16.mxu0 0
    %1954 = vmatpush1.bf16.msra.mxu0 0
    %1955 = vmatprep.subr.bf16.mxu0 0
    %1956 = vmatpush1.bf16.msra.mxu0 %v1937
    %1957 = vmatprep.subr.bf16.mxu0 0
    %1958 = vmatpush1.bf16.msra.mxu0 %v1936
    %1959 = vmatprep.subr.bf16.mxu0 0
    %1960 = vmatpush2.bf16.msra.mxu0 0
    %1961 = vmatprep.subr.bf16.mxu0 0
    %1962 = vmatpush2.bf16.msra.mxu0 0
    %1963 = vmatprep.subr.bf16.mxu0 0
    %1964 = vmatpush2.bf16.msra.mxu0 0
    %1965 = vmatprep.subr.bf16.mxu0 0
    %1966 = vmatpush2.bf16.msra.mxu0 0
    %1967 = vmatprep.subr.bf16.mxu0 0
    %1968 = vmatpush2.bf16.msra.mxu0 0
    %1969 = vmatprep.subr.bf16.mxu0 0
    %1970 = vmatpush2.bf16.msra.mxu0 0
    %1971 = vmatprep.subr.bf16.mxu0 0
    %1972 = vmatpush2.bf16.msra.mxu0 0
    %1973 = vmatprep.subr.bf16.mxu0 0
    %1974 = vmatpush2.bf16.msra.mxu0 0
    %1975 = vmatprep.mubr.bf16.mxu0 0
    %1976 = vmatmul.mubr.bf16.gmra.mxu0 %v1941
    %v1977 = vpop.f32.mrf.mxu0
    %v1978 = vadd.f32 %v1926, %v1977
    %v1979 = vpop.f32.mrf.mxu0
    %v1980 = vpop.f32.mrf.mxu0
    %v1981 = vadd.f32 %v1926, %v1980
    %v1982 = vpop.f32.mrf.mxu0
    %1983 = vdwg.mxu0
    %v1984 = vmax.f32 %v1978, 0.0
    %v1985 = vmax.f32 %v1981, 0.0
    %v1986 = vpack.c.bf16 %v1985, %v1984
    %v1987 = vld [vmem:[%s12] sm:$0xf]
    %v1988 = vld [vmem:[%s12 + $0x4] sm:$0xf]
    %v1989 = vld [vmem:[%s12 + $0x8] sm:$0xf]
    %v1990 = vld [vmem:[%s12 + $0xc] sm:$0xf]
    %v1991 = vld [vmem:[%s12 + $0x10] sm:$0xf]
    %v1992 = vld [vmem:[%s12 + $0x14] sm:$0xf]
    %v1993 = vld [vmem:[%s12 + $0x18] sm:$0xf]
    %v1994 = vld [vmem:[%s12 + $0x1c] sm:$0xf]
    %v1995 = vld [vmem:[%s12 + $0x20] sm:$0xf]
    %v1996 = vld [vmem:[%s12 + $0x24] sm:$0xf]
    %v1997 = vld [vmem:[%s12 + $0x28] sm:$0xf]
    %v1998 = vld [vmem:[%s12 + $0x2c] sm:$0xf]
    %v1999 = vld [vmem:[%s12 + $0x30] sm:$0xf]
    %v2000 = vld [vmem:[%s12 + $0x34] sm:$0xf]
    %v2001 = vld [vmem:[%s12 + $0x38] sm:$0xf]
    %v2002 = vld [vmem:[%s12 + $0x3c] sm:$0xf]
    %v2003 = vld [vmem:[%s13] sm:$0x1]
    %v2005 = vlaneseq
    %v2006 = vshrl.u32 %v2005, 7
    %v2007 = vsub.s32 0, %v2006
    %v2008 = vrot.slane %v2003, %v2007
    %v2026 = vunpack.c.l.b16 %v1987
    %v2027 = vunpack.c.l.b16 %v1988
    %v2028 = vunpack.c.l.b16 %v1989
    %v2029 = vunpack.c.l.b16 %v1990
    %v2030 = vunpack.c.l.b16 %v1991
    %v2031 = vunpack.c.l.b16 %v1992
    %v2032 = vunpack.c.l.b16 %v1993
    %v2033 = vunpack.c.l.b16 %v1994
    %v2034 = vunpack.c.l.b16 %v1995
    %v2035 = vunpack.c.l.b16 %v1996
    %v2036 = vunpack.c.l.b16 %v1997
    %v2037 = vunpack.c.l.b16 %v1998
    %v2038 = vunpack.c.l.b16 %v1999
    %v2039 = vunpack.c.l.b16 %v2000
    %v2040 = vunpack.c.l.b16 %v2001
    %v2041 = vunpack.c.l.b16 %v2002
    %v2042 = vpack.c.b16 %v2027, %v2026
    %v2043 = vpack.c.b16 %v2029, %v2028
    %v2044 = vpack.c.b16 %v2031, %v2030
    %v2045 = vpack.c.b16 %v2033, %v2032
    %v2046 = vpack.c.b16 %v2035, %v2034
    %v2047 = vpack.c.b16 %v2037, %v2036
    %v2048 = vpack.c.b16 %v2039, %v2038
    %v2049 = vpack.c.b16 %v2041, %v2040
    %2058 = vmatprep.subr.bf16.mxu0 0
    %2059 = vmatpush1.bf16.msra.mxu0 %v2049
    %2060 = vmatprep.subr.bf16.mxu0 0
    %2061 = vmatpush1.bf16.msra.mxu0 %v2048
    %2062 = vmatprep.subr.bf16.mxu0 0
    %2063 = vmatpush1.bf16.msra.mxu0 %v2047
    %2064 = vmatprep.subr.bf16.mxu0 0
    %2065 = vmatpush1.bf16.msra.mxu0 %v2046
    %2066 = vmatprep.subr.bf16.mxu0 0
    %2067 = vmatpush1.bf16.msra.mxu0 %v2045
    %2068 = vmatprep.subr.bf16.mxu0 0
    %2069 = vmatpush1.bf16.msra.mxu0 %v2044
    %2070 = vmatprep.subr.bf16.mxu0 0
    %2071 = vmatpush1.bf16.msra.mxu0 %v2043
    %2072 = vmatprep.subr.bf16.mxu0 0
    %2073 = vmatpush1.bf16.msra.mxu0 %v2042
    %2074 = vmatprep.subr.bf16.mxu0 0
    %2075 = vmatpush2.bf16.msra.mxu0 0
    %2076 = vmatprep.subr.bf16.mxu0 0
    %2077 = vmatpush2.bf16.msra.mxu0 0
    %2078 = vmatprep.subr.bf16.mxu0 0
    %2079 = vmatpush2.bf16.msra.mxu0 0
    %2080 = vmatprep.subr.bf16.mxu0 0
    %2081 = vmatpush2.bf16.msra.mxu0 0
    %2082 = vmatprep.subr.bf16.mxu0 0
    %2083 = vmatpush2.bf16.msra.mxu0 0
    %2084 = vmatprep.subr.bf16.mxu0 0
    %2085 = vmatpush2.bf16.msra.mxu0 0
    %2086 = vmatprep.subr.bf16.mxu0 0
    %2087 = vmatpush2.bf16.msra.mxu0 0
    %2088 = vmatprep.subr.bf16.mxu0 0
    %2089 = vmatpush2.bf16.msra.mxu0 0
    %2090 = vmatprep.mubr.bf16.mxu0 0
    %2091 = vmatmul.mubr.bf16.gmra.mxu0 %v1986
    %v2092 = vpop.f32.mrf.mxu0
    %v2093 = vadd.f32 %v2008, %v2092
    %v2094 = vpop.f32.mrf.mxu0
    %v2095 = vpop.f32.mrf.mxu0
    %v2096 = vadd.f32 %v2008, %v2095
    %v2097 = vpop.f32.mrf.mxu0
    %2098 = vdwg.mxu0
    %v2099 = vadd.f32 %v1870, %v2093
    %v2100 = vadd.f32 %v1871, %v2096
    %2101 = vst.msk [vmem:[#allocation2] sm:$0xff] %vm53, %v2099
    %2102 = vst.msk [vmem:[#allocation2 + $0x8] sm:$0xff] %vm53, %v2100
    // Predicated region
    $region58: #{tpu_custom_call.1} parent=1 // pred_check
      _
    $region59: #{tpu_custom_call.1} parent=1 // pred_check_branch
      %2104 = sbr.rel (0) target = $region61
    $region60: #{tpu_custom_call.1} parent=1 // pred_region
      %s2106 = ssub.s32 256, 256
      %2107 = vsyncadd [#allocation3], %s2106
      %s2108 = sshll.u32 [#allocation2], 4
      %s2109 = int_to_ptr.vmem [resolvable:$true] %s2108
      %2114 = dma.vmem_to_hbm [thread:$0]  %s2109, 256, %s14, [#allocation3], 128, 128, 8
    $region61: #{tpu_custom_call.1} parent=1 // pred_fallthru
      _
    // Predicated region
    $region62: #{tpu_custom_call.1} parent=1 // pred_check
      _
    $region63: #{tpu_custom_call.1} parent=1 // pred_check_branch
      %2116 = sbr.rel (0) target = $region65
    $region64: #{tpu_custom_call.1} parent=1 // pred_region
      %2117 = dma.done [#allocation3], 256
    $region65: #{tpu_custom_call.1} parent=1 // pred_fallthru
      _
    %2118 = vsyncpa [#allocation3], 1

</llo_original>
